<compile_context>
chip_gen: v7x
topology: tpu7x:2x2x1
jax: 0.10.0
libtpu: 0.0.40
codegen_flags: <defaults>
</compile_context>

<pallas_src>
import math

import jax
import jax.numpy as jnp
from jax.experimental import pallas as pl
from jax.experimental.pallas import tpu as pltpu

# ----------------------------- model config ---------------------------------
D_MODEL = 32
NUM_HEADS = 4
D_FF = 64
D_K = D_MODEL // NUM_HEADS
LN_EPS = 1e-5


def _layer_norm(x, gamma, beta):
    # x: (N, D); gamma/beta: (1, D) -- all f32
    mean = jnp.mean(x, axis=-1, keepdims=True)
    var = jnp.mean(jnp.square(x - mean), axis=-1, keepdims=True)
    inv = jax.lax.rsqrt(var + LN_EPS)
    return (x - mean) * inv * gamma + beta


def transformer_block_kernel(
    x_ref,                       # (Bb, S, D)  f32
    wqkv_ref, bqkv_ref,          # (D, 3D) bf16, (1, 3D) f32
    wo_ref, bo_ref,              # (D, D)  bf16, (1, D)  f32
    ln1_g_ref, ln1_b_ref,        # (1, D) f32
    w1_ref, b1_ref,              # (D, F) bf16, (1, F) f32
    w2_ref, b2_ref,              # (F, D) bf16, (1, D) f32
    ln2_g_ref, ln2_b_ref,        # (1, D) f32
    o_ref,                       # (Bb, S, D) f32
):
    Bb, S, D = x_ref.shape
    H, dk = NUM_HEADS, D_K
    N = Bb * S

    x = x_ref[...]                                # (Bb, S, D) f32
    x2d = x.reshape(N, D)                         # residual path (leading-dim reshape)

    # ---- packed QKV projection: one (N,32)@(32,96) bf16 MXU push -----------
    qkv = jnp.dot(x2d.astype(jnp.bfloat16), wqkv_ref[...],
                  preferred_element_type=jnp.float32) + bqkv_ref[...]    # (N, 3D) f32

    scale = 1.0 / math.sqrt(dk)

    # ---- attention, batched over Bb per head; softmax in f32 ---------------
    # Per-head score/ctx matmuls are tiny (S=8, dk=8) and latency-bound, so
    # operands stay f32 (no extra cast passes -- cheapest on v5e's VPU).
    ctx_heads = []
    for h in range(H):
        qh = (qkv[:, h * dk:(h + 1) * dk] * scale).reshape(Bb, S, dk)
        kh = qkv[:, D + h * dk: D + (h + 1) * dk].reshape(Bb, S, dk)
        vh = qkv[:, 2 * D + h * dk: 2 * D + (h + 1) * dk].reshape(Bb, S, dk)
        s = jnp.einsum("bsd,btd->bst", qh, kh,
                       preferred_element_type=jnp.float32)               # (Bb,S,S)
        s = s - jnp.max(s, axis=-1, keepdims=True)
        p = jnp.exp(s)
        p = p * pl.reciprocal(jnp.sum(p, axis=-1, keepdims=True), approx=True)
        ctx_heads.append(jnp.einsum("bst,btd->bsd", p, vh,
                                    preferred_element_type=jnp.float32))  # (Bb,S,dk)

    # heads concatenated along lanes -> single output-projection matmul
    ctx = jnp.concatenate(ctx_heads, axis=-1).reshape(N, D)              # (N, D) f32
    attn = jnp.dot(ctx.astype(jnp.bfloat16), wo_ref[...],
                   preferred_element_type=jnp.float32) + bo_ref[...]

    y1 = _layer_norm(attn + x2d, ln1_g_ref[...], ln1_b_ref[...])         # (N, D) f32

    # ---- position-wise feed-forward (ReLU) ----------------------------------
    h1 = jnp.dot(y1.astype(jnp.bfloat16), w1_ref[...],
                 preferred_element_type=jnp.float32) + b1_ref[...]
    h1 = jnp.maximum(h1, 0.0)
    ff = jnp.dot(h1.astype(jnp.bfloat16), w2_ref[...],
                 preferred_element_type=jnp.float32) + b2_ref[...]
    y2 = _layer_norm(ff + y1, ln2_g_ref[...], ln2_b_ref[...])

    # NOTE: a lane-dense (Bb, S*D) output slab would avoid masked 32-lane
    # stores, but the required (N,32)->(Bb,256) in-kernel relayout is not a
    # reliably supported Mosaic reshape; at this size the store cost is noise.
    o_ref[...] = y2.reshape(Bb, S, D)


# ------------------------ one-time weight packing ----------------------------
def pack_params(params):
    """Hoisted out of the per-call path: pack QKV + cast matmul weights to bf16."""
    return {
        "wqkv": jnp.concatenate([params["wq"], params["wk"], params["wv"]],
                                axis=1).astype(jnp.bfloat16),            # (D, 3D)
        "bqkv": jnp.concatenate([params["bq"], params["bk"], params["bv"]],
                                axis=1),                                  # (1, 3D)
        "wo": params["wo"].astype(jnp.bfloat16), "bo": params["bo"],
        "ln1_g": params["ln1_g"], "ln1_b": params["ln1_b"],
        "w1": params["w1"].astype(jnp.bfloat16), "b1": params["b1"],
        "w2": params["w2"].astype(jnp.bfloat16), "b2": params["b2"],
        "ln2_g": params["ln2_g"], "ln2_b": params["ln2_b"],
    }


def _num_tensorcores():
    # v7x chips have 2 TensorCores; v5e/v6e have 1.
    try:
        kind = jax.devices()[0].device_kind.lower()
    except Exception:
        return 1
    return 2 if ("7x" in kind or "v7" in kind) else 1


def transformer_block(x, packed, *, block_b=None):
    """x: (B, S, D) float32. packed: output of pack_params()."""
    B, S, D = x.shape
    assert D == D_MODEL
    F = D_FF
    H, dk = NUM_HEADS, D_K

    if block_b is None:
        block_b = B                       # one big step on single-TC chips
        n_tc = _num_tensorcores()
        if n_tc > 1 and B % n_tc == 0:
            block_b = B // n_tc           # >= 2 parallel steps to feed both v7x TCs
        # keep per-step rows modest (VMEM is never binding at these sizes)
        while block_b * S > 512 and block_b % 2 == 0:
            block_b //= 2
    assert B % block_b == 0, "B must be divisible by block_b"

    weight_args = (
        packed["wqkv"], packed["bqkv"],
        packed["wo"], packed["bo"],
        packed["ln1_g"], packed["ln1_b"],
        packed["w1"], packed["b1"],
        packed["w2"], packed["b2"],
        packed["ln2_g"], packed["ln2_b"],
    )

    def replicated(a):
        nd = a.ndim
        return pl.BlockSpec(a.shape, lambda i, _nd=nd: (0,) * _nd)

    in_specs = [pl.BlockSpec((block_b, S, D), lambda i: (i, 0, 0))]
    in_specs += [replicated(w) for w in weight_args]

    # advisory cost estimate for XLA's scheduler
    n_tok = B * S
    flops = (2 * n_tok * D * (3 * D)          # packed QKV projection
             + 4 * B * H * S * S * dk         # scores + context
             + 2 * n_tok * D * D              # output projection
             + 4 * n_tok * D * F)             # feed-forward
    transcendentals = B * H * S * S + B * H * S + 2 * n_tok   # exp, recip, rsqrt
    bytes_accessed = (2 * n_tok * D * 4                       # x in + out (f32)
                      + (3 * D * D + D * D + 2 * D * F) * 2   # bf16 weights
                      + (3 * D + 2 * D + F + 4 * D) * 4)      # f32 biases / LN params

    return pl.pallas_call(
        transformer_block_kernel,
        out_shape=jax.ShapeDtypeStruct((B, S, D), jnp.float32),
        grid_spec=pltpu.PrefetchScalarGridSpec(
            num_scalar_prefetch=0,
            grid=(B // block_b,),
            in_specs=in_specs,
            out_specs=pl.BlockSpec((block_b, S, D), lambda i: (i, 0, 0)),
        ),
        compiler_params=pltpu.CompilerParams(
            dimension_semantics=("parallel",)),
        cost_estimate=pl.CostEstimate(
            flops=int(flops),
            transcendentals=int(transcendentals),
            bytes_accessed=int(bytes_accessed)),
    )(x, *weight_args)


# --------------------------- parameter init ----------------------------------
def xavier_uniform(key, fan_in, fan_out):
    bound = math.sqrt(6.0 / (fan_in + fan_out))
    return jax.random.uniform(key, (fan_in, fan_out), jnp.float32, -bound, bound)


def init_params(key):
    keys = jax.random.split(key, 6)
    D, F = D_MODEL, D_FF
    zeros_d = jnp.zeros((1, D), jnp.float32)
    return {
        # attention projections, stored as (in_features, out_features)
        "wq": xavier_uniform(keys[0], D, D), "bq": zeros_d,
        "wk": xavier_uniform(keys[1], D, D), "bk": zeros_d,
        "wv": xavier_uniform(keys[2], D, D), "bv": zeros_d,
        "wo": xavier_uniform(keys[3], D, D), "bo": zeros_d,
        "ln1_g": jnp.ones((1, D), jnp.float32), "ln1_b": zeros_d,
        "w1": xavier_uniform(keys[4], D, F), "b1": jnp.zeros((1, F), jnp.float32),
        "w2": xavier_uniform(keys[5], F, D), "b2": zeros_d,
        "ln2_g": jnp.ones((1, D), jnp.float32), "ln2_b": zeros_d,
    }


# --------------------------- pure-JAX reference -------------------------------
def _reference(x, params):
    B, S, D = x.shape
    H, dk = NUM_HEADS, D_K
    q = x @ params["wq"] + params["bq"]
    k = x @ params["wk"] + params["bk"]
    v = x @ params["wv"] + params["bv"]

    def split(t):  # (B,S,D) -> (B,H,S,dk)
        return t.reshape(B, S, H, dk).transpose(0, 2, 1, 3)

    qh, kh, vh = split(q), split(k), split(v)
    scores = jnp.einsum("bhsd,bhtd->bhst", qh, kh) / math.sqrt(dk)
    p = jax.nn.softmax(scores, axis=-1)
    ctx = jnp.einsum("bhst,bhtd->bhsd", p, vh).transpose(0, 2, 1, 3).reshape(B, S, D)
    attn = ctx @ params["wo"] + params["bo"]

    def ln(t, g, b):
        m = t.mean(-1, keepdims=True)
        var = ((t - m) ** 2).mean(-1, keepdims=True)
        return (t - m) * jax.lax.rsqrt(var + LN_EPS) * g + b

    y1 = ln(attn + x, params["ln1_g"], params["ln1_b"])
    h1 = jnp.maximum(y1 @ params["w1"] + params["b1"], 0.0)
    return ln(h1 @ params["w2"] + params["b2"] + y1, params["ln2_g"], params["ln2_b"])


if __name__ == "__main__":
    key = jax.random.PRNGKey(0)
    k_x, k_p = jax.random.split(key)

    B, S = 2, 8
    x = jax.random.normal(k_x, (B, S, D_MODEL), jnp.float32)
    params = init_params(k_p)
    packed = pack_params(params)   # one-time packing, outside the per-call path

    out = jax.block_until_ready(transformer_block(x, packed))
    assert out.shape == (B, S, D_MODEL)
    assert bool(jnp.all(jnp.isfinite(out)))

    # bf16 projection matmuls + approx softmax reciprocal => eval-mode tolerance.
    # (For training use, set approx=False and keep all matmuls f32 to tighten.)
    ref = _reference(x, params)
    assert bool(jnp.allclose(out, ref, atol=0.1, rtol=0.1))
    # TODO(synk): attention mask / return_attention paths not implemented
    # (mask=None default); dropout is an eval-mode no-op.
    print("KERNEL_OK")
</pallas_src>

<mosaic_0001>
module attributes {stable_mosaic.version = 11 : i64} {
  func.func @transformer_block_kernel(%arg0: i32, %arg1: memref<2x8x32xf32, #tpu.memory_space<vmem>>, %arg2: memref<32x96xbf16, #tpu.memory_space<vmem>>, %arg3: memref<1x96xf32, #tpu.memory_space<vmem>>, %arg4: memref<32x32xbf16, #tpu.memory_space<vmem>>, %arg5: memref<1x32xf32, #tpu.memory_space<vmem>>, %arg6: memref<1x32xf32, #tpu.memory_space<vmem>>, %arg7: memref<1x32xf32, #tpu.memory_space<vmem>>, %arg8: memref<32x64xbf16, #tpu.memory_space<vmem>>, %arg9: memref<1x64xf32, #tpu.memory_space<vmem>>, %arg10: memref<64x32xbf16, #tpu.memory_space<vmem>>, %arg11: memref<1x32xf32, #tpu.memory_space<vmem>>, %arg12: memref<1x32xf32, #tpu.memory_space<vmem>>, %arg13: memref<1x32xf32, #tpu.memory_space<vmem>>, %arg14: memref<2x8x32xf32, #tpu.memory_space<vmem>>) attributes {dimension_semantics = [#tpu.dimension_semantics<parallel>], iteration_bounds = array<i64: 1>, scalar_prefetch = 0 : i64, scratch_operands = 0 : i64, tpu.core_type = #tpu.core_type<tc>, window_params = [{transform_indices = @transform_0, window_bounds = array<i64: 2, 8, 32>}, {pipeline_mode = #tpu.pipeline_mode<synchronous>, transform_indices = @transform_1, window_bounds = array<i64: 32, 96>}, {pipeline_mode = #tpu.pipeline_mode<synchronous>, transform_indices = @transform_2, window_bounds = array<i64: 1, 96>}, {pipeline_mode = #tpu.pipeline_mode<synchronous>, transform_indices = @transform_3, window_bounds = array<i64: 32, 32>}, {pipeline_mode = #tpu.pipeline_mode<synchronous>, transform_indices = @transform_4, window_bounds = array<i64: 1, 32>}, {pipeline_mode = #tpu.pipeline_mode<synchronous>, transform_indices = @transform_5, window_bounds = array<i64: 1, 32>}, {pipeline_mode = #tpu.pipeline_mode<synchronous>, transform_indices = @transform_6, window_bounds = array<i64: 1, 32>}, {pipeline_mode = #tpu.pipeline_mode<synchronous>, transform_indices = @transform_7, window_bounds = array<i64: 32, 64>}, {pipeline_mode = #tpu.pipeline_mode<synchronous>, transform_indices = @transform_8, window_bounds = array<i64: 1, 64>}, {pipeline_mode = #tpu.pipeline_mode<synchronous>, transform_indices = @transform_9, window_bounds = array<i64: 64, 32>}, {pipeline_mode = #tpu.pipeline_mode<synchronous>, transform_indices = @transform_10, window_bounds = array<i64: 1, 32>}, {pipeline_mode = #tpu.pipeline_mode<synchronous>, transform_indices = @transform_11, window_bounds = array<i64: 1, 32>}, {pipeline_mode = #tpu.pipeline_mode<synchronous>, transform_indices = @transform_12, window_bounds = array<i64: 1, 32>}, {transform_indices = @transform_13, window_bounds = array<i64: 2, 8, 32>}]} {
    %c0 = arith.constant 0 : index
    %c0_0 = arith.constant 0 : index
    %c0_1 = arith.constant 0 : index
    %0 = vector.load %arg1[%c0, %c0_0, %c0_1] : memref<2x8x32xf32, #tpu.memory_space<vmem>>, vector<2x8x32xf32>
    %1 = vector.shape_cast %0 : vector<2x8x32xf32> to vector<16x32xf32>
    %2 = arith.truncf %1 : vector<16x32xf32> to vector<16x32xbf16>
    %c0_2 = arith.constant 0 : index
    %c0_3 = arith.constant 0 : index
    %3 = vector.load %arg2[%c0_2, %c0_3] : memref<32x96xbf16, #tpu.memory_space<vmem>>, vector<32x96xbf16>
    %cst = arith.constant dense<0.000000e+00> : vector<16x96xf32>
    %4 = tpu.matmul %2, %3, %cst {dimension_numbers = #tpu.dot_dimension_numbers<[1], [0], [0], [1], [0, 0, 1, 1], [], []>} : vector<16x32xbf16>, vector<32x96xbf16>, vector<16x96xf32> -> vector<16x96xf32>
    %c0_4 = arith.constant 0 : index
    %c0_5 = arith.constant 0 : index
    %5 = vector.load %arg3[%c0_4, %c0_5] : memref<1x96xf32, #tpu.memory_space<vmem>>, vector<1x96xf32>
    %6 = vector.broadcast %5 : vector<1x96xf32> to vector<16x96xf32>
    %7 = arith.addf %4, %6 : vector<16x96xf32>
    %8 = vector.extract_strided_slice %7 {offsets = [0, 0], sizes = [16, 8], strides = [1, 1]} : vector<16x96xf32> to vector<16x8xf32>
    %cst_6 = arith.constant 0.353553385 : f32
    %9 = vector.broadcast %cst_6 : f32 to vector<16x8xf32>
    %10 = arith.mulf %8, %9 : vector<16x8xf32>
    %11 = vector.shape_cast %10 : vector<16x8xf32> to vector<2x8x8xf32>
    %12 = vector.extract_strided_slice %7 {offsets = [0, 32], sizes = [16, 8], strides = [1, 1]} : vector<16x96xf32> to vector<16x8xf32>
    %13 = vector.shape_cast %12 : vector<16x8xf32> to vector<2x8x8xf32>
    %14 = vector.extract_strided_slice %7 {offsets = [0, 64], sizes = [16, 8], strides = [1, 1]} : vector<16x96xf32> to vector<16x8xf32>
    %15 = vector.shape_cast %14 : vector<16x8xf32> to vector<2x8x8xf32>
    "tpu.trace_start"() <{level = 10 : i32, message = "bsd,btd->bst"}> : () -> ()
    %cst_7 = arith.constant dense<0.000000e+00> : vector<2x8x8xf32>
    %16 = tpu.matmul %11, %13, %cst_7 {dimension_numbers = #tpu.dot_dimension_numbers<[2], [2], [1], [1], [0, 0, 0, 1, 1, 1], [0], [0]>} : vector<2x8x8xf32>, vector<2x8x8xf32>, vector<2x8x8xf32> -> vector<2x8x8xf32>
    "tpu.trace_stop"() : () -> ()
    %cst_8 = arith.constant dense<0xFF800000> : vector<2x8xf32>
    %17 = vector.multi_reduction <maximumf>, %16, %cst_8 [2] : vector<2x8x8xf32> to vector<2x8xf32>
    %18 = vector.shape_cast %17 : vector<2x8xf32> to vector<2x8x1xf32>
    %19 = vector.broadcast %18 : vector<2x8x1xf32> to vector<2x8x8xf32>
    %20 = arith.subf %16, %19 : vector<2x8x8xf32>
    %21 = math.exp %20 : vector<2x8x8xf32>
    %cst_9 = arith.constant dense<0.000000e+00> : vector<2x8xf32>
    %22 = vector.multi_reduction <add>, %21, %cst_9 [2] : vector<2x8x8xf32> to vector<2x8xf32>
    %23 = vector.shape_cast %22 : vector<2x8xf32> to vector<2x8x1xf32>
    %24 = tpu.reciprocal %23 {approx = true} : vector<2x8x1xf32> -> vector<2x8x1xf32>
    %25 = vector.broadcast %24 : vector<2x8x1xf32> to vector<2x8x8xf32>
    %26 = arith.mulf %21, %25 : vector<2x8x8xf32>
    "tpu.trace_start"() <{level = 10 : i32, message = "bst,btd->bsd"}> : () -> ()
    %cst_10 = arith.constant dense<0.000000e+00> : vector<2x8x8xf32>
    %27 = tpu.matmul %26, %15, %cst_10 {dimension_numbers = #tpu.dot_dimension_numbers<[2], [1], [1], [2], [0, 0, 0, 1, 1, 2], [0], [0]>} : vector<2x8x8xf32>, vector<2x8x8xf32>, vector<2x8x8xf32> -> vector<2x8x8xf32>
    "tpu.trace_stop"() : () -> ()
    %28 = vector.extract_strided_slice %7 {offsets = [0, 8], sizes = [16, 8], strides = [1, 1]} : vector<16x96xf32> to vector<16x8xf32>
    %cst_11 = arith.constant 0.353553385 : f32
    %29 = vector.broadcast %cst_11 : f32 to vector<16x8xf32>
    %30 = arith.mulf %28, %29 : vector<16x8xf32>
    %31 = vector.shape_cast %30 : vector<16x8xf32> to vector<2x8x8xf32>
    %32 = vector.extract_strided_slice %7 {offsets = [0, 40], sizes = [16, 8], strides = [1, 1]} : vector<16x96xf32> to vector<16x8xf32>
    %33 = vector.shape_cast %32 : vector<16x8xf32> to vector<2x8x8xf32>
    %34 = vector.extract_strided_slice %7 {offsets = [0, 72], sizes = [16, 8], strides = [1, 1]} : vector<16x96xf32> to vector<16x8xf32>
    %35 = vector.shape_cast %34 : vector<16x8xf32> to vector<2x8x8xf32>
    "tpu.trace_start"() <{level = 10 : i32, message = "bsd,btd->bst"}> : () -> ()
    %cst_12 = arith.constant dense<0.000000e+00> : vector<2x8x8xf32>
    %36 = tpu.matmul %31, %33, %cst_12 {dimension_numbers = #tpu.dot_dimension_numbers<[2], [2], [1], [1], [0, 0, 0, 1, 1, 1], [0], [0]>} : vector<2x8x8xf32>, vector<2x8x8xf32>, vector<2x8x8xf32> -> vector<2x8x8xf32>
    "tpu.trace_stop"() : () -> ()
    %cst_13 = arith.constant dense<0xFF800000> : vector<2x8xf32>
    %37 = vector.multi_reduction <maximumf>, %36, %cst_13 [2] : vector<2x8x8xf32> to vector<2x8xf32>
    %38 = vector.shape_cast %37 : vector<2x8xf32> to vector<2x8x1xf32>
    %39 = vector.broadcast %38 : vector<2x8x1xf32> to vector<2x8x8xf32>
    %40 = arith.subf %36, %39 : vector<2x8x8xf32>
    %41 = math.exp %40 : vector<2x8x8xf32>
    %cst_14 = arith.constant dense<0.000000e+00> : vector<2x8xf32>
    %42 = vector.multi_reduction <add>, %41, %cst_14 [2] : vector<2x8x8xf32> to vector<2x8xf32>
    %43 = vector.shape_cast %42 : vector<2x8xf32> to vector<2x8x1xf32>
    %44 = tpu.reciprocal %43 {approx = true} : vector<2x8x1xf32> -> vector<2x8x1xf32>
    %45 = vector.broadcast %44 : vector<2x8x1xf32> to vector<2x8x8xf32>
    %46 = arith.mulf %41, %45 : vector<2x8x8xf32>
    "tpu.trace_start"() <{level = 10 : i32, message = "bst,btd->bsd"}> : () -> ()
    %cst_15 = arith.constant dense<0.000000e+00> : vector<2x8x8xf32>
    %47 = tpu.matmul %46, %35, %cst_15 {dimension_numbers = #tpu.dot_dimension_numbers<[2], [1], [1], [2], [0, 0, 0, 1, 1, 2], [0], [0]>} : vector<2x8x8xf32>, vector<2x8x8xf32>, vector<2x8x8xf32> -> vector<2x8x8xf32>
    "tpu.trace_stop"() : () -> ()
    %48 = vector.extract_strided_slice %7 {offsets = [0, 16], sizes = [16, 8], strides = [1, 1]} : vector<16x96xf32> to vector<16x8xf32>
    %cst_16 = arith.constant 0.353553385 : f32
    %49 = vector.broadcast %cst_16 : f32 to vector<16x8xf32>
    %50 = arith.mulf %48, %49 : vector<16x8xf32>
    %51 = vector.shape_cast %50 : vector<16x8xf32> to vector<2x8x8xf32>
    %52 = vector.extract_strided_slice %7 {offsets = [0, 48], sizes = [16, 8], strides = [1, 1]} : vector<16x96xf32> to vector<16x8xf32>
    %53 = vector.shape_cast %52 : vector<16x8xf32> to vector<2x8x8xf32>
    %54 = vector.extract_strided_slice %7 {offsets = [0, 80], sizes = [16, 8], strides = [1, 1]} : vector<16x96xf32> to vector<16x8xf32>
    %55 = vector.shape_cast %54 : vector<16x8xf32> to vector<2x8x8xf32>
    "tpu.trace_start"() <{level = 10 : i32, message = "bsd,btd->bst"}> : () -> ()
    %cst_17 = arith.constant dense<0.000000e+00> : vector<2x8x8xf32>
    %56 = tpu.matmul %51, %53, %cst_17 {dimension_numbers = #tpu.dot_dimension_numbers<[2], [2], [1], [1], [0, 0, 0, 1, 1, 1], [0], [0]>} : vector<2x8x8xf32>, vector<2x8x8xf32>, vector<2x8x8xf32> -> vector<2x8x8xf32>
    "tpu.trace_stop"() : () -> ()
    %cst_18 = arith.constant dense<0xFF800000> : vector<2x8xf32>
    %57 = vector.multi_reduction <maximumf>, %56, %cst_18 [2] : vector<2x8x8xf32> to vector<2x8xf32>
    %58 = vector.shape_cast %57 : vector<2x8xf32> to vector<2x8x1xf32>
    %59 = vector.broadcast %58 : vector<2x8x1xf32> to vector<2x8x8xf32>
    %60 = arith.subf %56, %59 : vector<2x8x8xf32>
    %61 = math.exp %60 : vector<2x8x8xf32>
    %cst_19 = arith.constant dense<0.000000e+00> : vector<2x8xf32>
    %62 = vector.multi_reduction <add>, %61, %cst_19 [2] : vector<2x8x8xf32> to vector<2x8xf32>
    %63 = vector.shape_cast %62 : vector<2x8xf32> to vector<2x8x1xf32>
    %64 = tpu.reciprocal %63 {approx = true} : vector<2x8x1xf32> -> vector<2x8x1xf32>
    %65 = vector.broadcast %64 : vector<2x8x1xf32> to vector<2x8x8xf32>
    %66 = arith.mulf %61, %65 : vector<2x8x8xf32>
    "tpu.trace_start"() <{level = 10 : i32, message = "bst,btd->bsd"}> : () -> ()
    %cst_20 = arith.constant dense<0.000000e+00> : vector<2x8x8xf32>
    %67 = tpu.matmul %66, %55, %cst_20 {dimension_numbers = #tpu.dot_dimension_numbers<[2], [1], [1], [2], [0, 0, 0, 1, 1, 2], [0], [0]>} : vector<2x8x8xf32>, vector<2x8x8xf32>, vector<2x8x8xf32> -> vector<2x8x8xf32>
    "tpu.trace_stop"() : () -> ()
    %68 = vector.extract_strided_slice %7 {offsets = [0, 24], sizes = [16, 8], strides = [1, 1]} : vector<16x96xf32> to vector<16x8xf32>
    %cst_21 = arith.constant 0.353553385 : f32
    %69 = vector.broadcast %cst_21 : f32 to vector<16x8xf32>
    %70 = arith.mulf %68, %69 : vector<16x8xf32>
    %71 = vector.shape_cast %70 : vector<16x8xf32> to vector<2x8x8xf32>
    %72 = vector.extract_strided_slice %7 {offsets = [0, 56], sizes = [16, 8], strides = [1, 1]} : vector<16x96xf32> to vector<16x8xf32>
    %73 = vector.shape_cast %72 : vector<16x8xf32> to vector<2x8x8xf32>
    %74 = vector.extract_strided_slice %7 {offsets = [0, 88], sizes = [16, 8], strides = [1, 1]} : vector<16x96xf32> to vector<16x8xf32>
    %75 = vector.shape_cast %74 : vector<16x8xf32> to vector<2x8x8xf32>
    "tpu.trace_start"() <{level = 10 : i32, message = "bsd,btd->bst"}> : () -> ()
    %cst_22 = arith.constant dense<0.000000e+00> : vector<2x8x8xf32>
    %76 = tpu.matmul %71, %73, %cst_22 {dimension_numbers = #tpu.dot_dimension_numbers<[2], [2], [1], [1], [0, 0, 0, 1, 1, 1], [0], [0]>} : vector<2x8x8xf32>, vector<2x8x8xf32>, vector<2x8x8xf32> -> vector<2x8x8xf32>
    "tpu.trace_stop"() : () -> ()
    %cst_23 = arith.constant dense<0xFF800000> : vector<2x8xf32>
    %77 = vector.multi_reduction <maximumf>, %76, %cst_23 [2] : vector<2x8x8xf32> to vector<2x8xf32>
    %78 = vector.shape_cast %77 : vector<2x8xf32> to vector<2x8x1xf32>
    %79 = vector.broadcast %78 : vector<2x8x1xf32> to vector<2x8x8xf32>
    %80 = arith.subf %76, %79 : vector<2x8x8xf32>
    %81 = math.exp %80 : vector<2x8x8xf32>
    %cst_24 = arith.constant dense<0.000000e+00> : vector<2x8xf32>
    %82 = vector.multi_reduction <add>, %81, %cst_24 [2] : vector<2x8x8xf32> to vector<2x8xf32>
    %83 = vector.shape_cast %82 : vector<2x8xf32> to vector<2x8x1xf32>
    %84 = tpu.reciprocal %83 {approx = true} : vector<2x8x1xf32> -> vector<2x8x1xf32>
    %85 = vector.broadcast %84 : vector<2x8x1xf32> to vector<2x8x8xf32>
    %86 = arith.mulf %81, %85 : vector<2x8x8xf32>
    "tpu.trace_start"() <{level = 10 : i32, message = "bst,btd->bsd"}> : () -> ()
    %cst_25 = arith.constant dense<0.000000e+00> : vector<2x8x8xf32>
    %87 = tpu.matmul %86, %75, %cst_25 {dimension_numbers = #tpu.dot_dimension_numbers<[2], [1], [1], [2], [0, 0, 0, 1, 1, 2], [0], [0]>} : vector<2x8x8xf32>, vector<2x8x8xf32>, vector<2x8x8xf32> -> vector<2x8x8xf32>
    "tpu.trace_stop"() : () -> ()
    %88 = tpu.concatenate %27, %47, %67, %87 in 2 : vector<2x8x8xf32>, vector<2x8x8xf32>, vector<2x8x8xf32>, vector<2x8x8xf32> -> vector<2x8x32xf32>
    %89 = vector.shape_cast %88 : vector<2x8x32xf32> to vector<16x32xf32>
    %90 = arith.truncf %89 : vector<16x32xf32> to vector<16x32xbf16>
    %c0_26 = arith.constant 0 : index
    %c0_27 = arith.constant 0 : index
    %91 = vector.load %arg4[%c0_26, %c0_27] : memref<32x32xbf16, #tpu.memory_space<vmem>>, vector<32x32xbf16>
    %cst_28 = arith.constant dense<0.000000e+00> : vector<16x32xf32>
    %92 = tpu.matmul %90, %91, %cst_28 {dimension_numbers = #tpu.dot_dimension_numbers<[1], [0], [0], [1], [0, 0, 1, 1], [], []>} : vector<16x32xbf16>, vector<32x32xbf16>, vector<16x32xf32> -> vector<16x32xf32>
    %c0_29 = arith.constant 0 : index
    %c0_30 = arith.constant 0 : index
    %93 = vector.load %arg5[%c0_29, %c0_30] : memref<1x32xf32, #tpu.memory_space<vmem>>, vector<1x32xf32>
    %94 = vector.broadcast %93 : vector<1x32xf32> to vector<16x32xf32>
    %95 = arith.addf %92, %94 : vector<16x32xf32>
    %96 = arith.addf %95, %1 : vector<16x32xf32>
    %c0_31 = arith.constant 0 : index
    %c0_32 = arith.constant 0 : index
    %97 = vector.load %arg6[%c0_31, %c0_32] : memref<1x32xf32, #tpu.memory_space<vmem>>, vector<1x32xf32>
    %c0_33 = arith.constant 0 : index
    %c0_34 = arith.constant 0 : index
    %98 = vector.load %arg7[%c0_33, %c0_34] : memref<1x32xf32, #tpu.memory_space<vmem>>, vector<1x32xf32>
    %cst_35 = arith.constant dense<0.000000e+00> : vector<16xf32>
    %99 = vector.multi_reduction <add>, %96, %cst_35 [1] : vector<16x32xf32> to vector<16xf32>
    %100 = vector.shape_cast %99 : vector<16xf32> to vector<16x1xf32>
    %cst_36 = arith.constant 3.200000e+01 : f32
    %101 = vector.broadcast %cst_36 : f32 to vector<16x1xf32>
    %102 = arith.divf %100, %101 : vector<16x1xf32>
    %103 = vector.broadcast %102 : vector<16x1xf32> to vector<16x32xf32>
    %104 = arith.subf %96, %103 : vector<16x32xf32>
    %105 = arith.mulf %104, %104 : vector<16x32xf32>
    %cst_37 = arith.constant dense<0.000000e+00> : vector<16xf32>
    %106 = vector.multi_reduction <add>, %105, %cst_37 [1] : vector<16x32xf32> to vector<16xf32>
    %107 = vector.shape_cast %106 : vector<16xf32> to vector<16x1xf32>
    %cst_38 = arith.constant 3.200000e+01 : f32
    %108 = vector.broadcast %cst_38 : f32 to vector<16x1xf32>
    %109 = arith.divf %107, %108 : vector<16x1xf32>
    %cst_39 = arith.constant 9.99999974E-6 : f32
    %110 = vector.broadcast %cst_39 : f32 to vector<16x1xf32>
    %111 = arith.addf %109, %110 : vector<16x1xf32>
    %112 = math.rsqrt %111 : vector<16x1xf32>
    %113 = vector.broadcast %102 : vector<16x1xf32> to vector<16x32xf32>
    %114 = arith.subf %96, %113 : vector<16x32xf32>
    %115 = vector.broadcast %112 : vector<16x1xf32> to vector<16x32xf32>
    %116 = arith.mulf %114, %115 : vector<16x32xf32>
    %117 = vector.broadcast %97 : vector<1x32xf32> to vector<16x32xf32>
    %118 = arith.mulf %116, %117 : vector<16x32xf32>
    %119 = vector.broadcast %98 : vector<1x32xf32> to vector<16x32xf32>
    %120 = arith.addf %118, %119 : vector<16x32xf32>
    %121 = arith.truncf %120 : vector<16x32xf32> to vector<16x32xbf16>
    %c0_40 = arith.constant 0 : index
    %c0_41 = arith.constant 0 : index
    %122 = vector.load %arg8[%c0_40, %c0_41] : memref<32x64xbf16, #tpu.memory_space<vmem>>, vector<32x64xbf16>
    %cst_42 = arith.constant dense<0.000000e+00> : vector<16x64xf32>
    %123 = tpu.matmul %121, %122, %cst_42 {dimension_numbers = #tpu.dot_dimension_numbers<[1], [0], [0], [1], [0, 0, 1, 1], [], []>} : vector<16x32xbf16>, vector<32x64xbf16>, vector<16x64xf32> -> vector<16x64xf32>
    %c0_43 = arith.constant 0 : index
    %c0_44 = arith.constant 0 : index
    %124 = vector.load %arg9[%c0_43, %c0_44] : memref<1x64xf32, #tpu.memory_space<vmem>>, vector<1x64xf32>
    %125 = vector.broadcast %124 : vector<1x64xf32> to vector<16x64xf32>
    %126 = arith.addf %123, %125 : vector<16x64xf32>
    %cst_45 = arith.constant 0.000000e+00 : f32
    %127 = vector.broadcast %cst_45 : f32 to vector<16x64xf32>
    %128 = arith.maximumf %126, %127 : vector<16x64xf32>
    %129 = arith.truncf %128 : vector<16x64xf32> to vector<16x64xbf16>
    %c0_46 = arith.constant 0 : index
    %c0_47 = arith.constant 0 : index
    %130 = vector.load %arg10[%c0_46, %c0_47] : memref<64x32xbf16, #tpu.memory_space<vmem>>, vector<64x32xbf16>
    %cst_48 = arith.constant dense<0.000000e+00> : vector<16x32xf32>
    %131 = tpu.matmul %129, %130, %cst_48 {dimension_numbers = #tpu.dot_dimension_numbers<[1], [0], [0], [1], [0, 0, 1, 1], [], []>} : vector<16x64xbf16>, vector<64x32xbf16>, vector<16x32xf32> -> vector<16x32xf32>
    %c0_49 = arith.constant 0 : index
    %c0_50 = arith.constant 0 : index
    %132 = vector.load %arg11[%c0_49, %c0_50] : memref<1x32xf32, #tpu.memory_space<vmem>>, vector<1x32xf32>
    %133 = vector.broadcast %132 : vector<1x32xf32> to vector<16x32xf32>
    %134 = arith.addf %131, %133 : vector<16x32xf32>
    %135 = arith.addf %134, %120 : vector<16x32xf32>
    %c0_51 = arith.constant 0 : index
    %c0_52 = arith.constant 0 : index
    %136 = vector.load %arg12[%c0_51, %c0_52] : memref<1x32xf32, #tpu.memory_space<vmem>>, vector<1x32xf32>
    %c0_53 = arith.constant 0 : index
    %c0_54 = arith.constant 0 : index
    %137 = vector.load %arg13[%c0_53, %c0_54] : memref<1x32xf32, #tpu.memory_space<vmem>>, vector<1x32xf32>
    %cst_55 = arith.constant dense<0.000000e+00> : vector<16xf32>
    %138 = vector.multi_reduction <add>, %135, %cst_55 [1] : vector<16x32xf32> to vector<16xf32>
    %139 = vector.shape_cast %138 : vector<16xf32> to vector<16x1xf32>
    %cst_56 = arith.constant 3.200000e+01 : f32
    %140 = vector.broadcast %cst_56 : f32 to vector<16x1xf32>
    %141 = arith.divf %139, %140 : vector<16x1xf32>
    %142 = vector.broadcast %141 : vector<16x1xf32> to vector<16x32xf32>
    %143 = arith.subf %135, %142 : vector<16x32xf32>
    %144 = arith.mulf %143, %143 : vector<16x32xf32>
    %cst_57 = arith.constant dense<0.000000e+00> : vector<16xf32>
    %145 = vector.multi_reduction <add>, %144, %cst_57 [1] : vector<16x32xf32> to vector<16xf32>
    %146 = vector.shape_cast %145 : vector<16xf32> to vector<16x1xf32>
    %cst_58 = arith.constant 3.200000e+01 : f32
    %147 = vector.broadcast %cst_58 : f32 to vector<16x1xf32>
    %148 = arith.divf %146, %147 : vector<16x1xf32>
    %cst_59 = arith.constant 9.99999974E-6 : f32
    %149 = vector.broadcast %cst_59 : f32 to vector<16x1xf32>
    %150 = arith.addf %148, %149 : vector<16x1xf32>
    %151 = math.rsqrt %150 : vector<16x1xf32>
    %152 = vector.broadcast %141 : vector<16x1xf32> to vector<16x32xf32>
    %153 = arith.subf %135, %152 : vector<16x32xf32>
    %154 = vector.broadcast %151 : vector<16x1xf32> to vector<16x32xf32>
    %155 = arith.mulf %153, %154 : vector<16x32xf32>
    %156 = vector.broadcast %136 : vector<1x32xf32> to vector<16x32xf32>
    %157 = arith.mulf %155, %156 : vector<16x32xf32>
    %158 = vector.broadcast %137 : vector<1x32xf32> to vector<16x32xf32>
    %159 = arith.addf %157, %158 : vector<16x32xf32>
    %160 = vector.shape_cast %159 : vector<16x32xf32> to vector<2x8x32xf32>
    %c0_60 = arith.constant 0 : index
    %c0_61 = arith.constant 0 : index
    %c0_62 = arith.constant 0 : index
    %161 = vector.load %arg14[%c0_60, %c0_61, %c0_62] : memref<2x8x32xf32, #tpu.memory_space<vmem>>, vector<2x8x32xf32>
    tpu.vector_store %arg14[%c0_60, %c0_61, %c0_62], %160 {strides = array<i32>} : memref<2x8x32xf32, #tpu.memory_space<vmem>>, vector<2x8x32xf32>,
    return
  }
  func.func @transform_0(%arg0: i32) -> (i32, i32, i32) {
    %c0_i32 = arith.constant 0 : i32
    %c0_i32_0 = arith.constant 0 : i32
    %c0_i32_1 = arith.constant 0 : i32
    return %arg0, %c0_i32, %c0_i32_0 : i32, i32, i32
  }
  func.func @transform_1(%arg0: i32) -> (i32, i32) {
    %c0_i32 = arith.constant 0 : i32
    %c0_i32_0 = arith.constant 0 : i32
    %c0_i32_1 = arith.constant 0 : i32
    return %c0_i32, %c0_i32_0 : i32, i32
  }
  func.func @transform_2(%arg0: i32) -> (i32, i32) {
    %c0_i32 = arith.constant 0 : i32
    %c0_i32_0 = arith.constant 0 : i32
    %c0_i32_1 = arith.constant 0 : i32
    return %c0_i32, %c0_i32_0 : i32, i32
  }
  func.func @transform_3(%arg0: i32) -> (i32, i32) {
    %c0_i32 = arith.constant 0 : i32
    %c0_i32_0 = arith.constant 0 : i32
    %c0_i32_1 = arith.constant 0 : i32
    return %c0_i32, %c0_i32_0 : i32, i32
  }
  func.func @transform_4(%arg0: i32) -> (i32, i32) {
    %c0_i32 = arith.constant 0 : i32
    %c0_i32_0 = arith.constant 0 : i32
    %c0_i32_1 = arith.constant 0 : i32
    return %c0_i32, %c0_i32_0 : i32, i32
  }
  func.func @transform_5(%arg0: i32) -> (i32, i32) {
    %c0_i32 = arith.constant 0 : i32
    %c0_i32_0 = arith.constant 0 : i32
    %c0_i32_1 = arith.constant 0 : i32
    return %c0_i32, %c0_i32_0 : i32, i32
  }
  func.func @transform_6(%arg0: i32) -> (i32, i32) {
    %c0_i32 = arith.constant 0 : i32
    %c0_i32_0 = arith.constant 0 : i32
    %c0_i32_1 = arith.constant 0 : i32
    return %c0_i32, %c0_i32_0 : i32, i32
  }
  func.func @transform_7(%arg0: i32) -> (i32, i32) {
    %c0_i32 = arith.constant 0 : i32
    %c0_i32_0 = arith.constant 0 : i32
    %c0_i32_1 = arith.constant 0 : i32
    return %c0_i32, %c0_i32_0 : i32, i32
  }
  func.func @transform_8(%arg0: i32) -> (i32, i32) {
    %c0_i32 = arith.constant 0 : i32
    %c0_i32_0 = arith.constant 0 : i32
    %c0_i32_1 = arith.constant 0 : i32
    return %c0_i32, %c0_i32_0 : i32, i32
  }
  func.func @transform_9(%arg0: i32) -> (i32, i32) {
    %c0_i32 = arith.constant 0 : i32
    %c0_i32_0 = arith.constant 0 : i32
    %c0_i32_1 = arith.constant 0 : i32
    return %c0_i32, %c0_i32_0 : i32, i32
  }
  func.func @transform_10(%arg0: i32) -> (i32, i32) {
    %c0_i32 = arith.constant 0 : i32
    %c0_i32_0 = arith.constant 0 : i32
    %c0_i32_1 = arith.constant 0 : i32
    return %c0_i32, %c0_i32_0 : i32, i32
  }
  func.func @transform_11(%arg0: i32) -> (i32, i32) {
    %c0_i32 = arith.constant 0 : i32
    %c0_i32_0 = arith.constant 0 : i32
    %c0_i32_1 = arith.constant 0 : i32
    return %c0_i32, %c0_i32_0 : i32, i32
  }
  func.func @transform_12(%arg0: i32) -> (i32, i32) {
    %c0_i32 = arith.constant 0 : i32
    %c0_i32_0 = arith.constant 0 : i32
    %c0_i32_1 = arith.constant 0 : i32
    return %c0_i32, %c0_i32_0 : i32, i32
  }
  func.func @transform_13(%arg0: i32) -> (i32, i32, i32) {
    %c0_i32 = arith.constant 0 : i32
    %c0_i32_0 = arith.constant 0 : i32
    %c0_i32_1 = arith.constant 0 : i32
    return %arg0, %c0_i32, %c0_i32_0 : i32, i32, i32
  }
}

</mosaic_0001>

<llo_original>
// kernel: tpu_custom_call.1
$region0: #{tpu_custom_call.1}
  #allocation0 [shape = 'u32[]', space=smem, size = 0x4, offset = 0x4, fixed_abs, tag = 'smem constant byte address 0x4 - core index']
  #allocation1 [shape = 'u32[144,128]{1,0:T(1,128)}', space=vmem, size = 0x12000, scoped, tag = 'internal scratch']
  %s0 = inlined_call_operand.vmem [shape: f32[2,8,32], index: 0, kind: input, shape index: {}]
  %s1 = inlined_call_operand.vmem [shape: bf16[32,96], index: 1, kind: input, shape index: {}]
  %s2 = inlined_call_operand.vmem [shape: f32[1,96], index: 2, kind: input, shape index: {}]
  %s3 = inlined_call_operand.vmem [shape: bf16[32,32], index: 3, kind: input, shape index: {}]
  %s4 = inlined_call_operand.vmem [shape: f32[1,32], index: 4, kind: input, shape index: {}]
  %s5 = inlined_call_operand.vmem [shape: f32[1,32], index: 5, kind: input, shape index: {}]
  %s6 = inlined_call_operand.vmem [shape: f32[1,32], index: 6, kind: input, shape index: {}]
  %s7 = inlined_call_operand.hbm [shape: bf16[32,64], index: 7, kind: input, shape index: {}]
  %s8 = inlined_call_operand.vmem [shape: f32[1,64], index: 8, kind: input, shape index: {}]
  %s9 = inlined_call_operand.vmem [shape: bf16[64,32], index: 9, kind: input, shape index: {}]
  %s10 = inlined_call_operand.vmem [shape: f32[1,32], index: 10, kind: input, shape index: {}]
  %s11 = inlined_call_operand.vmem [shape: f32[1,32], index: 11, kind: input, shape index: {}]
  %s12 = inlined_call_operand.vmem [shape: f32[1,32], index: 12, kind: input, shape index: {}]
  %s13 = inlined_call_operand.hbm [shape: f32[2,8,32], index: 13, kind: output, shape index: {}]
  %s14 = sld [smem:[#allocation0]]
  $region66: #{tpu_custom_call.1} parent=0
    _
  %s16 = ssub.s32 1, %s14
  %s17 = scalar_select 0, %s16, %s14
  $region1: #{tpu_custom_call.1} parent=0
    #allocation2 [shape = 'u8[8192]{0}', space=vmem, size = 0x2000, scoped, tag = 'input window, operand 7, single buffered']
    #allocation3 [shape = 's32[1]{0}', space=sflag, size = 0x4, scoped, tag = 'scoped memory for tpu_custom_call.1']
    #allocation4 [shape = 's32[1]{0}', space=sflag, size = 0x4, scoped, tag = 'scoped memory for tpu_custom_call.1']
    #allocation5 [shape = 'u8[8192]{0}', space=vmem, size = 0x2000, scoped, tag = 'output window, operand 0, single buffered']
    %18 = vsyncpa [#allocation3], 0
    %19 = vsyncpa [#allocation4], 0
    // Predicated region
    $region2: #{tpu_custom_call.1} parent=1 // pred_check
      _
    $region3: #{tpu_custom_call.1} parent=1 // pred_check_branch
      %21 = sbr.rel (0) target = $region5
    $region4: #{tpu_custom_call.1} parent=1 // pred_region
      _
    $region5: #{tpu_custom_call.1} parent=1 // pred_fallthru
      _
    // Predicated region
    $region6: #{tpu_custom_call.1} parent=1 // pred_check
      _
    $region7: #{tpu_custom_call.1} parent=1 // pred_check_branch
      %23 = sbr.rel (0) target = $region9
    $region8: #{tpu_custom_call.1} parent=1 // pred_region
      _
    $region9: #{tpu_custom_call.1} parent=1 // pred_fallthru
      _
    // Predicated region
    $region10: #{tpu_custom_call.1} parent=1 // pred_check
      _
    $region11: #{tpu_custom_call.1} parent=1 // pred_check_branch
      %25 = sbr.rel (0) target = $region13
    $region12: #{tpu_custom_call.1} parent=1 // pred_region
      _
    $region13: #{tpu_custom_call.1} parent=1 // pred_fallthru
      _
    // Predicated region
    $region14: #{tpu_custom_call.1} parent=1 // pred_check
      _
    $region15: #{tpu_custom_call.1} parent=1 // pred_check_branch
      %27 = sbr.rel (0) target = $region17
    $region16: #{tpu_custom_call.1} parent=1 // pred_region
      _
    $region17: #{tpu_custom_call.1} parent=1 // pred_fallthru
      _
    // Predicated region
    $region18: #{tpu_custom_call.1} parent=1 // pred_check
      _
    $region19: #{tpu_custom_call.1} parent=1 // pred_check_branch
      %29 = sbr.rel (0) target = $region21
    $region20: #{tpu_custom_call.1} parent=1 // pred_region
      _
    $region21: #{tpu_custom_call.1} parent=1 // pred_fallthru
      _
    // Predicated region
    $region22: #{tpu_custom_call.1} parent=1 // pred_check
      _
    $region23: #{tpu_custom_call.1} parent=1 // pred_check_branch
      %31 = sbr.rel (0) target = $region25
    $region24: #{tpu_custom_call.1} parent=1 // pred_region
      _
    $region25: #{tpu_custom_call.1} parent=1 // pred_fallthru
      _
    // Predicated region
    $region26: #{tpu_custom_call.1} parent=1 // pred_check
      _
    $region27: #{tpu_custom_call.1} parent=1 // pred_check_branch
      %33 = sbr.rel (0) target = $region29
    $region28: #{tpu_custom_call.1} parent=1 // pred_region
      _
    $region29: #{tpu_custom_call.1} parent=1 // pred_fallthru
      _
    // Predicated region
    $region30: #{tpu_custom_call.1} parent=1 // pred_check
      _
    $region31: #{tpu_custom_call.1} parent=1 // pred_check_branch
      %35 = sbr.rel (0) target = $region33
    $region32: #{tpu_custom_call.1} parent=1 // pred_region
      %s37 = ssub.s32 256, 256
      %38 = vsyncadd [#allocation3], %s37
      %s39 = sshll.u32 [#allocation2], 4
      %s40 = int_to_ptr.vmem [resolvable:$true] %s39
      %45 = dma.hbm_to_vmem [thread:$0]  %s7, 256, %s40, [#allocation3], 64, 64, 4
    $region33: #{tpu_custom_call.1} parent=1 // pred_fallthru
      _
    // Predicated region
    $region34: #{tpu_custom_call.1} parent=1 // pred_check
      _
    $region35: #{tpu_custom_call.1} parent=1 // pred_check_branch
      %47 = sbr.rel (0) target = $region37
    $region36: #{tpu_custom_call.1} parent=1 // pred_region
      _
    $region37: #{tpu_custom_call.1} parent=1 // pred_fallthru
      _
    // Predicated region
    $region38: #{tpu_custom_call.1} parent=1 // pred_check
      _
    $region39: #{tpu_custom_call.1} parent=1 // pred_check_branch
      %49 = sbr.rel (0) target = $region41
    $region40: #{tpu_custom_call.1} parent=1 // pred_region
      _
    $region41: #{tpu_custom_call.1} parent=1 // pred_fallthru
      _
    // Predicated region
    $region42: #{tpu_custom_call.1} parent=1 // pred_check
      _
    $region43: #{tpu_custom_call.1} parent=1 // pred_check_branch
      %51 = sbr.rel (0) target = $region45
    $region44: #{tpu_custom_call.1} parent=1 // pred_region
      _
    $region45: #{tpu_custom_call.1} parent=1 // pred_fallthru
      _
    // Predicated region
    $region46: #{tpu_custom_call.1} parent=1 // pred_check
      _
    $region47: #{tpu_custom_call.1} parent=1 // pred_check_branch
      %53 = sbr.rel (0) target = $region49
    $region48: #{tpu_custom_call.1} parent=1 // pred_region
      _
    $region49: #{tpu_custom_call.1} parent=1 // pred_fallthru
      _
    // Predicated region
    $region50: #{tpu_custom_call.1} parent=1 // pred_check
      _
    $region51: #{tpu_custom_call.1} parent=1 // pred_check_branch
      %55 = sbr.rel (0) target = $region53
    $region52: #{tpu_custom_call.1} parent=1 // pred_region
      _
    $region53: #{tpu_custom_call.1} parent=1 // pred_fallthru
      _
    // Predicated region
    $region54: #{tpu_custom_call.1} parent=1 // pred_check
      _
    $region55: #{tpu_custom_call.1} parent=1 // pred_check_branch
      %57 = sbr.rel (0) target = $region57
    $region56: #{tpu_custom_call.1} parent=1 // pred_region
      %58 = dma.done [#allocation3], 256
    $region57: #{tpu_custom_call.1} parent=1 // pred_fallthru
      _
    %v60 = vld [vmem:[%s0] sm:$0xff]
    %v61 = vld [vmem:[%s0 + $0x8] sm:$0xff]
    %v62 = vpack.c.bf16 %v61, %v60
    %v63 = vld [vmem:[%s1] sm:$0xf]
    %v64 = vld [vmem:[%s1 + $0x4] sm:$0xf]
    %v65 = vld [vmem:[%s1 + $0x8] sm:$0xf]
    %v66 = vld [vmem:[%s1 + $0xc] sm:$0xf]
    %v67 = vld [vmem:[%s2] sm:$0x1]
    %v69 = vlaneseq
    %v70 = vshrl.u32 %v69, 7
    %v71 = vsub.s32 0, %v70
    %v72 = vrot.slane %v67, %v71
    %v78 = vunpack.c.l.b16 %v63
    %v79 = vunpack.c.l.b16 %v64
    %v80 = vunpack.c.l.b16 %v65
    %v81 = vunpack.c.l.b16 %v66
    %v82 = vpack.c.b16 %v79, %v78
    %v83 = vpack.c.b16 %v81, %v80
    %vm86 = vcmask 261120
    %v88 = vsel %vm86, %v62, 0
    %90 = vmatprep.subr.bf16.mxu0 0
    %91 = vmatpush1.bf16.msra.mxu0 %v82
    %92 = vmatprep.subr.bf16.mxu0 0
    %93 = vmatpush1.bf16.msra.mxu0 %v83
    %94 = vmatprep.subr.bf16.mxu0 0
    %95 = vmatpush1.bf16.msra.mxu0 0
    %96 = vmatprep.subr.bf16.mxu0 0
    %97 = vmatpush1.bf16.msra.mxu0 0
    %98 = vmatprep.subr.bf16.mxu0 0
    %99 = vmatpush1.bf16.msra.mxu0 0
    %100 = vmatprep.subr.bf16.mxu0 0
    %101 = vmatpush1.bf16.msra.mxu0 0
    %102 = vmatprep.subr.bf16.mxu0 0
    %103 = vmatpush1.bf16.msra.mxu0 0
    %104 = vmatprep.subr.bf16.mxu0 0
    %105 = vmatpush1.bf16.msra.mxu0 0
    %106 = vmatprep.subr.bf16.mxu0 0
    %107 = vmatpush1.bf16.msra.mxu0 0
    %108 = vmatprep.subr.bf16.mxu0 0
    %109 = vmatpush1.bf16.msra.mxu0 0
    %110 = vmatprep.subr.bf16.mxu0 0
    %111 = vmatpush1.bf16.msra.mxu0 0
    %112 = vmatprep.subr.bf16.mxu0 0
    %113 = vmatpush1.bf16.msra.mxu0 0
    %114 = vmatprep.subr.bf16.mxu0 0
    %115 = vmatpush1.bf16.msra.mxu0 0
    %116 = vmatprep.subr.bf16.mxu0 0
    %117 = vmatpush1.bf16.msra.mxu0 0
    %118 = vmatprep.subr.bf16.mxu0 0
    %119 = vmatpush1.bf16.msra.mxu0 0
    %120 = vmatprep.subr.bf16.mxu0 0
    %121 = vmatpush1.bf16.msra.mxu0 0
    %122 = vmatprep.mubr.bf16.mxu0 0
    %123 = vmatmul.mubr.bf16.gmra.mrb[0].mxu0 %v88
    %v124 = vpop.f32.mrb[0].mxu0
    %v125 = vadd.f32 %v72, %v124
    %v126 = vpop.f32.mrb[0].mxu0
    %v127 = vpop.f32.mrb[0].mxu0
    %v128 = vadd.f32 %v72, %v127
    %v129 = vpop.f32.mrb[0].mxu0
    %130 = vdwg.mxu0
    %v131 = vmul.f32 %v125, 0.35355338
    %v132 = vmul.f32 %v128, 0.35355338
    %134 = vrot.lane.b32.xlu0 %v125, 96
    %v135 = vpop.permute.xlu0 %134
    %vm136 = vcmask 64512
    %v138 = vsel %vm136, %v131, 0
    %v140 = vsel %vm136, %v135, 0
    %142 = vmatprep.subr.mxu0 0.0
    %143 = vmatpush1.xpose.msra.mxu0 %v140
    %144 = vmatprep.subr.mxu0 0.0
    %145 = vmatpush1.xpose.msra.mxu0 0.0
    %146 = vmatprep.subr.mxu0 0.0
    %147 = vmatpush1.xpose.msra.mxu0 0.0
    %148 = vmatprep.subr.mxu0 0.0
    %149 = vmatpush1.xpose.msra.mxu0 0.0
    %150 = vmatprep.subr.mxu0 0.0
    %151 = vmatpush1.xpose.msra.mxu0 0.0
    %152 = vmatprep.subr.mxu0 0.0
    %153 = vmatpush1.xpose.msra.mxu0 0.0
    %154 = vmatprep.subr.mxu0 0.0
    %155 = vmatpush1.xpose.msra.mxu0 0.0
    %156 = vmatprep.subr.mxu0 0.0
    %157 = vmatpush1.xpose.msra.mxu0 0.0
    %158 = vmatprep.subr.mxu0 0.0
    %159 = vmatpush1.xpose.msra.mxu0 0.0
    %160 = vmatprep.subr.mxu0 0.0
    %161 = vmatpush1.xpose.msra.mxu0 0.0
    %162 = vmatprep.subr.mxu0 0.0
    %163 = vmatpush1.xpose.msra.mxu0 0.0
    %164 = vmatprep.subr.mxu0 0.0
    %165 = vmatpush1.xpose.msra.mxu0 0.0
    %166 = vmatprep.subr.mxu0 0.0
    %167 = vmatpush1.xpose.msra.mxu0 0.0
    %168 = vmatprep.subr.mxu0 0.0
    %169 = vmatpush1.xpose.msra.mxu0 0.0
    %170 = vmatprep.subr.mxu0 0.0
    %171 = vmatpush1.xpose.msra.mxu0 0.0
    %172 = vmatprep.subr.mxu0 0.0
    %173 = vmatpush1.xpose.msra.mxu0 0.0
    %174 = vmatprep.subr.mxu0 0.0
    %175 = vmatpush1.xpose.msra.mxu0 0.0
    %176 = vmatprep.subr.mxu0 0.0
    %177 = vmatpush1.xpose.msra.mxu0 0.0
    %178 = vmatprep.subr.mxu0 0.0
    %179 = vmatpush1.xpose.msra.mxu0 0.0
    %180 = vmatprep.subr.mxu0 0.0
    %181 = vmatpush1.xpose.msra.mxu0 0.0
    %182 = vmatprep.subr.mxu0 0.0
    %183 = vmatpush1.xpose.msra.mxu0 0.0
    %184 = vmatprep.subr.mxu0 0.0
    %185 = vmatpush1.xpose.msra.mxu0 0.0
    %186 = vmatprep.subr.mxu0 0.0
    %187 = vmatpush1.xpose.msra.mxu0 0.0
    %188 = vmatprep.subr.mxu0 0.0
    %189 = vmatpush1.xpose.msra.mxu0 0.0
    %190 = vmatprep.subr.mxu0 0.0
    %191 = vmatpush1.xpose.msra.mxu0 0.0
    %192 = vmatprep.subr.mxu0 0.0
    %193 = vmatpush1.xpose.msra.mxu0 0.0
    %194 = vmatprep.subr.mxu0 0.0
    %195 = vmatpush1.xpose.msra.mxu0 0.0
    %196 = vmatprep.subr.mxu0 0.0
    %197 = vmatpush1.xpose.msra.mxu0 0.0
    %198 = vmatprep.subr.mxu0 0.0
    %199 = vmatpush1.xpose.msra.mxu0 0.0
    %200 = vmatprep.subr.mxu0 0.0
    %201 = vmatpush1.xpose.msra.mxu0 0.0
    %202 = vmatprep.subr.mxu0 0.0
    %203 = vmatpush1.xpose.msra.mxu0 0.0
    %204 = vmatprep.subr.mxu0 0.0
    %205 = vmatpush1.xpose.msra.mxu0 0.0
    %206 = vmatprep.mubr.f32.mxu0 0.0
    %207 = vmatmul.mubr.f32.gmra.mrb[0].mxu0 %v138
    %v208 = vpop.f32.mrb[0].mxu0
    %v209 = vadd.f32 0.0, %v208
    %v210 = vpop.f32.mrb[0].mxu0
    %211 = vdwg.mxu0
    %213 = vrot.lane.b32.xlu0 %v128, 96
    %v214 = vpop.permute.xlu0 %213
    %v216 = vsel %vm136, %v132, 0
    %v218 = vsel %vm136, %v214, 0
    %220 = vmatprep.subr.mxu0 0.0
    %221 = vmatpush1.xpose.msra.mxu0 %v218
    %222 = vmatprep.subr.mxu0 0.0
    %223 = vmatpush1.xpose.msra.mxu0 0.0
    %224 = vmatprep.subr.mxu0 0.0
    %225 = vmatpush1.xpose.msra.mxu0 0.0
    %226 = vmatprep.subr.mxu0 0.0
    %227 = vmatpush1.xpose.msra.mxu0 0.0
    %228 = vmatprep.subr.mxu0 0.0
    %229 = vmatpush1.xpose.msra.mxu0 0.0
    %230 = vmatprep.subr.mxu0 0.0
    %231 = vmatpush1.xpose.msra.mxu0 0.0
    %232 = vmatprep.subr.mxu0 0.0
    %233 = vmatpush1.xpose.msra.mxu0 0.0
    %234 = vmatprep.subr.mxu0 0.0
    %235 = vmatpush1.xpose.msra.mxu0 0.0
    %236 = vmatprep.subr.mxu0 0.0
    %237 = vmatpush1.xpose.msra.mxu0 0.0
    %238 = vmatprep.subr.mxu0 0.0
    %239 = vmatpush1.xpose.msra.mxu0 0.0
    %240 = vmatprep.subr.mxu0 0.0
    %241 = vmatpush1.xpose.msra.mxu0 0.0
    %242 = vmatprep.subr.mxu0 0.0
    %243 = vmatpush1.xpose.msra.mxu0 0.0
    %244 = vmatprep.subr.mxu0 0.0
    %245 = vmatpush1.xpose.msra.mxu0 0.0
    %246 = vmatprep.subr.mxu0 0.0
    %247 = vmatpush1.xpose.msra.mxu0 0.0
    %248 = vmatprep.subr.mxu0 0.0
    %249 = vmatpush1.xpose.msra.mxu0 0.0
    %250 = vmatprep.subr.mxu0 0.0
    %251 = vmatpush1.xpose.msra.mxu0 0.0
    %252 = vmatprep.subr.mxu0 0.0
    %253 = vmatpush1.xpose.msra.mxu0 0.0
    %254 = vmatprep.subr.mxu0 0.0
    %255 = vmatpush1.xpose.msra.mxu0 0.0
    %256 = vmatprep.subr.mxu0 0.0
    %257 = vmatpush1.xpose.msra.mxu0 0.0
    %258 = vmatprep.subr.mxu0 0.0
    %259 = vmatpush1.xpose.msra.mxu0 0.0
    %260 = vmatprep.subr.mxu0 0.0
    %261 = vmatpush1.xpose.msra.mxu0 0.0
    %262 = vmatprep.subr.mxu0 0.0
    %263 = vmatpush1.xpose.msra.mxu0 0.0
    %264 = vmatprep.subr.mxu0 0.0
    %265 = vmatpush1.xpose.msra.mxu0 0.0
    %266 = vmatprep.subr.mxu0 0.0
    %267 = vmatpush1.xpose.msra.mxu0 0.0
    %268 = vmatprep.subr.mxu0 0.0
    %269 = vmatpush1.xpose.msra.mxu0 0.0
    %270 = vmatprep.subr.mxu0 0.0
    %271 = vmatpush1.xpose.msra.mxu0 0.0
    %272 = vmatprep.subr.mxu0 0.0
    %273 = vmatpush1.xpose.msra.mxu0 0.0
    %274 = vmatprep.subr.mxu0 0.0
    %275 = vmatpush1.xpose.msra.mxu0 0.0
    %276 = vmatprep.subr.mxu0 0.0
    %277 = vmatpush1.xpose.msra.mxu0 0.0
    %278 = vmatprep.subr.mxu0 0.0
    %279 = vmatpush1.xpose.msra.mxu0 0.0
    %280 = vmatprep.subr.mxu0 0.0
    %281 = vmatpush1.xpose.msra.mxu0 0.0
    %282 = vmatprep.subr.mxu0 0.0
    %283 = vmatpush1.xpose.msra.mxu0 0.0
    %284 = vmatprep.mubr.f32.mxu0 0.0
    %285 = vmatmul.mubr.f32.gmra.mrb[0].mxu0 %v216
    %v286 = vpop.f32.mrb[0].mxu0
    %v287 = vadd.f32 0.0, %v286
    %v288 = vpop.f32.mrb[0].mxu0
    %289 = vdwg.mxu0
    %v290 = vsel %vm136, %v209, -inf
    %291 = vmax.xlane.f32.xlu0 %v290
    %v292 = vpop.xlane.xlu0 %291
    %v293 = vsel %vm136, %v287, -inf
    %294 = vmax.xlane.f32.xlu0 %v293
    %v295 = vpop.xlane.xlu0 %294
    %v296 = vsub.f32 %v209, %v292
    %v297 = vsub.f32 %v287, %v295
    %v298 = vmul.f32 %v296, 1.442695
    %v299 = vpow.pop %v298
    %v300 = vmul.f32 %v297, 1.442695
    %v301 = vpow.pop %v300
    %v302 = vsel %vm136, %v299, 0.0
    %303 = vadd.xlane.f32.xlu0 %v302
    %v304 = vpop.xlane.xlu0 %303
    %v305 = vsel %vm136, %v301, 0.0
    %306 = vadd.xlane.f32.xlu0 %v305
    %v307 = vpop.xlane.xlu0 %306
    %v308 = vrcp.pop %v304
    %v309 = vrcp.pop %v307
    %v310 = vmul.f32 %v299, %v308
    %v311 = vmul.f32 %v301, %v309
    %312 = vrot.lane.b32.xlu0 %v125, 64
    %v313 = vpop.permute.xlu0 %312
    %v316 = vsel %vm136, %v310, 0
    %318 = vmatprep.subr.mxu0 0.0
    %319 = vmatpush1.msra.mxu0 %v313
    %320 = vmatprep.subr.mxu0 0.0
    %321 = vmatpush1.msra.mxu0 0.0
    %322 = vmatprep.subr.mxu0 0.0
    %323 = vmatpush1.msra.mxu0 0.0
    %324 = vmatprep.subr.mxu0 0.0
    %325 = vmatpush1.msra.mxu0 0.0
    %326 = vmatprep.subr.mxu0 0.0
    %327 = vmatpush1.msra.mxu0 0.0
    %328 = vmatprep.subr.mxu0 0.0
    %329 = vmatpush1.msra.mxu0 0.0
    %330 = vmatprep.subr.mxu0 0.0
    %331 = vmatpush1.msra.mxu0 0.0
    %332 = vmatprep.subr.mxu0 0.0
    %333 = vmatpush1.msra.mxu0 0.0
    %334 = vmatprep.subr.mxu0 0.0
    %335 = vmatpush1.msra.mxu0 0.0
    %336 = vmatprep.subr.mxu0 0.0
    %337 = vmatpush1.msra.mxu0 0.0
    %338 = vmatprep.subr.mxu0 0.0
    %339 = vmatpush1.msra.mxu0 0.0
    %340 = vmatprep.subr.mxu0 0.0
    %341 = vmatpush1.msra.mxu0 0.0
    %342 = vmatprep.subr.mxu0 0.0
    %343 = vmatpush1.msra.mxu0 0.0
    %344 = vmatprep.subr.mxu0 0.0
    %345 = vmatpush1.msra.mxu0 0.0
    %346 = vmatprep.subr.mxu0 0.0
    %347 = vmatpush1.msra.mxu0 0.0
    %348 = vmatprep.subr.mxu0 0.0
    %349 = vmatpush1.msra.mxu0 0.0
    %350 = vmatprep.subr.mxu0 0.0
    %351 = vmatpush1.msra.mxu0 0.0
    %352 = vmatprep.subr.mxu0 0.0
    %353 = vmatpush1.msra.mxu0 0.0
    %354 = vmatprep.subr.mxu0 0.0
    %355 = vmatpush1.msra.mxu0 0.0
    %356 = vmatprep.subr.mxu0 0.0
    %357 = vmatpush1.msra.mxu0 0.0
    %358 = vmatprep.subr.mxu0 0.0
    %359 = vmatpush1.msra.mxu0 0.0
    %360 = vmatprep.subr.mxu0 0.0
    %361 = vmatpush1.msra.mxu0 0.0
    %362 = vmatprep.subr.mxu0 0.0
    %363 = vmatpush1.msra.mxu0 0.0
    %364 = vmatprep.subr.mxu0 0.0
    %365 = vmatpush1.msra.mxu0 0.0
    %366 = vmatprep.subr.mxu0 0.0
    %367 = vmatpush1.msra.mxu0 0.0
    %368 = vmatprep.subr.mxu0 0.0
    %369 = vmatpush1.msra.mxu0 0.0
    %370 = vmatprep.subr.mxu0 0.0
    %371 = vmatpush1.msra.mxu0 0.0
    %372 = vmatprep.subr.mxu0 0.0
    %373 = vmatpush1.msra.mxu0 0.0
    %374 = vmatprep.subr.mxu0 0.0
    %375 = vmatpush1.msra.mxu0 0.0
    %376 = vmatprep.subr.mxu0 0.0
    %377 = vmatpush1.msra.mxu0 0.0
    %378 = vmatprep.subr.mxu0 0.0
    %379 = vmatpush1.msra.mxu0 0.0
    %380 = vmatprep.subr.mxu0 0.0
    %381 = vmatpush1.msra.mxu0 0.0
    %382 = vmatprep.mubr.f32.mxu0 0.0
    %383 = vmatmul.mubr.f32.gmra.mrb[0].mxu0 %v316
    %v384 = vpop.f32.mrb[0].mxu0
    %v385 = vadd.f32 0.0, %v384
    %v386 = vpop.f32.mrb[0].mxu0
    %387 = vdwg.mxu0
    %388 = vrot.lane.b32.xlu0 %v128, 64
    %v389 = vpop.permute.xlu0 %388
    %v392 = vsel %vm136, %v311, 0
    %394 = vmatprep.subr.mxu0 0.0
    %395 = vmatpush1.msra.mxu0 %v389
    %396 = vmatprep.subr.mxu0 0.0
    %397 = vmatpush1.msra.mxu0 0.0
    %398 = vmatprep.subr.mxu0 0.0
    %399 = vmatpush1.msra.mxu0 0.0
    %400 = vmatprep.subr.mxu0 0.0
    %401 = vmatpush1.msra.mxu0 0.0
    %402 = vmatprep.subr.mxu0 0.0
    %403 = vmatpush1.msra.mxu0 0.0
    %404 = vmatprep.subr.mxu0 0.0
    %405 = vmatpush1.msra.mxu0 0.0
    %406 = vmatprep.subr.mxu0 0.0
    %407 = vmatpush1.msra.mxu0 0.0
    %408 = vmatprep.subr.mxu0 0.0
    %409 = vmatpush1.msra.mxu0 0.0
    %410 = vmatprep.subr.mxu0 0.0
    %411 = vmatpush1.msra.mxu0 0.0
    %412 = vmatprep.subr.mxu0 0.0
    %413 = vmatpush1.msra.mxu0 0.0
    %414 = vmatprep.subr.mxu0 0.0
    %415 = vmatpush1.msra.mxu0 0.0
    %416 = vmatprep.subr.mxu0 0.0
    %417 = vmatpush1.msra.mxu0 0.0
    %418 = vmatprep.subr.mxu0 0.0
    %419 = vmatpush1.msra.mxu0 0.0
    %420 = vmatprep.subr.mxu0 0.0
    %421 = vmatpush1.msra.mxu0 0.0
    %422 = vmatprep.subr.mxu0 0.0
    %423 = vmatpush1.msra.mxu0 0.0
    %424 = vmatprep.subr.mxu0 0.0
    %425 = vmatpush1.msra.mxu0 0.0
    %426 = vmatprep.subr.mxu0 0.0
    %427 = vmatpush1.msra.mxu0 0.0
    %428 = vmatprep.subr.mxu0 0.0
    %429 = vmatpush1.msra.mxu0 0.0
    %430 = vmatprep.subr.mxu0 0.0
    %431 = vmatpush1.msra.mxu0 0.0
    %432 = vmatprep.subr.mxu0 0.0
    %433 = vmatpush1.msra.mxu0 0.0
    %434 = vmatprep.subr.mxu0 0.0
    %435 = vmatpush1.msra.mxu0 0.0
    %436 = vmatprep.subr.mxu0 0.0
    %437 = vmatpush1.msra.mxu0 0.0
    %438 = vmatprep.subr.mxu0 0.0
    %439 = vmatpush1.msra.mxu0 0.0
    %440 = vmatprep.subr.mxu0 0.0
    %441 = vmatpush1.msra.mxu0 0.0
    %442 = vmatprep.subr.mxu0 0.0
    %443 = vmatpush1.msra.mxu0 0.0
    %444 = vmatprep.subr.mxu0 0.0
    %445 = vmatpush1.msra.mxu0 0.0
    %446 = vmatprep.subr.mxu0 0.0
    %447 = vmatpush1.msra.mxu0 0.0
    %448 = vmatprep.subr.mxu0 0.0
    %449 = vmatpush1.msra.mxu0 0.0
    %450 = vmatprep.subr.mxu0 0.0
    %451 = vmatpush1.msra.mxu0 0.0
    %452 = vmatprep.subr.mxu0 0.0
    %453 = vmatpush1.msra.mxu0 0.0
    %454 = vmatprep.subr.mxu0 0.0
    %455 = vmatpush1.msra.mxu0 0.0
    %456 = vmatprep.subr.mxu0 0.0
    %457 = vmatpush1.msra.mxu0 0.0
    %458 = vmatprep.mubr.f32.mxu0 0.0
    %459 = vmatmul.mubr.f32.gmra.mrb[0].mxu0 %v392
    %v460 = vpop.f32.mrb[0].mxu0
    %v461 = vadd.f32 0.0, %v460
    %v462 = vpop.f32.mrb[0].mxu0
    %463 = vdwg.mxu0
    %464 = vrot.lane.b32.xlu0 %v131, 120
    %v465 = vpop.permute.xlu0 %464
    %466 = vrot.lane.b32.xlu0 %v125, 88
    %v467 = vpop.permute.xlu0 %466
    %v468 = vsel %vm136, %v465, 0
    %v470 = vsel %vm136, %v467, 0
    %472 = vmatprep.subr.mxu0 0.0
    %473 = vmatpush1.xpose.msra.mxu0 %v470
    %474 = vmatprep.subr.mxu0 0.0
    %475 = vmatpush1.xpose.msra.mxu0 0.0
    %476 = vmatprep.subr.mxu0 0.0
    %477 = vmatpush1.xpose.msra.mxu0 0.0
    %478 = vmatprep.subr.mxu0 0.0
    %479 = vmatpush1.xpose.msra.mxu0 0.0
    %480 = vmatprep.subr.mxu0 0.0
    %481 = vmatpush1.xpose.msra.mxu0 0.0
    %482 = vmatprep.subr.mxu0 0.0
    %483 = vmatpush1.xpose.msra.mxu0 0.0
    %484 = vmatprep.subr.mxu0 0.0
    %485 = vmatpush1.xpose.msra.mxu0 0.0
    %486 = vmatprep.subr.mxu0 0.0
    %487 = vmatpush1.xpose.msra.mxu0 0.0
    %488 = vmatprep.subr.mxu0 0.0
    %489 = vmatpush1.xpose.msra.mxu0 0.0
    %490 = vmatprep.subr.mxu0 0.0
    %491 = vmatpush1.xpose.msra.mxu0 0.0
    %492 = vmatprep.subr.mxu0 0.0
    %493 = vmatpush1.xpose.msra.mxu0 0.0
    %494 = vmatprep.subr.mxu0 0.0
    %495 = vmatpush1.xpose.msra.mxu0 0.0
    %496 = vmatprep.subr.mxu0 0.0
    %497 = vmatpush1.xpose.msra.mxu0 0.0
    %498 = vmatprep.subr.mxu0 0.0
    %499 = vmatpush1.xpose.msra.mxu0 0.0
    %500 = vmatprep.subr.mxu0 0.0
    %501 = vmatpush1.xpose.msra.mxu0 0.0
    %502 = vmatprep.subr.mxu0 0.0
    %503 = vmatpush1.xpose.msra.mxu0 0.0
    %504 = vmatprep.subr.mxu0 0.0
    %505 = vmatpush1.xpose.msra.mxu0 0.0
    %506 = vmatprep.subr.mxu0 0.0
    %507 = vmatpush1.xpose.msra.mxu0 0.0
    %508 = vmatprep.subr.mxu0 0.0
    %509 = vmatpush1.xpose.msra.mxu0 0.0
    %510 = vmatprep.subr.mxu0 0.0
    %511 = vmatpush1.xpose.msra.mxu0 0.0
    %512 = vmatprep.subr.mxu0 0.0
    %513 = vmatpush1.xpose.msra.mxu0 0.0
    %514 = vmatprep.subr.mxu0 0.0
    %515 = vmatpush1.xpose.msra.mxu0 0.0
    %516 = vmatprep.subr.mxu0 0.0
    %517 = vmatpush1.xpose.msra.mxu0 0.0
    %518 = vmatprep.subr.mxu0 0.0
    %519 = vmatpush1.xpose.msra.mxu0 0.0
    %520 = vmatprep.subr.mxu0 0.0
    %521 = vmatpush1.xpose.msra.mxu0 0.0
    %522 = vmatprep.subr.mxu0 0.0
    %523 = vmatpush1.xpose.msra.mxu0 0.0
    %524 = vmatprep.subr.mxu0 0.0
    %525 = vmatpush1.xpose.msra.mxu0 0.0
    %526 = vmatprep.subr.mxu0 0.0
    %527 = vmatpush1.xpose.msra.mxu0 0.0
    %528 = vmatprep.subr.mxu0 0.0
    %529 = vmatpush1.xpose.msra.mxu0 0.0
    %530 = vmatprep.subr.mxu0 0.0
    %531 = vmatpush1.xpose.msra.mxu0 0.0
    %532 = vmatprep.subr.mxu0 0.0
    %533 = vmatpush1.xpose.msra.mxu0 0.0
    %534 = vmatprep.subr.mxu0 0.0
    %535 = vmatpush1.xpose.msra.mxu0 0.0
    %536 = vmatprep.mubr.f32.mxu0 0.0
    %537 = vmatmul.mubr.f32.gmra.mrb[0].mxu0 %v468
    %v538 = vpop.f32.mrb[0].mxu0
    %v539 = vadd.f32 0.0, %v538
    %v540 = vpop.f32.mrb[0].mxu0
    %541 = vdwg.mxu0
    %542 = vrot.lane.b32.xlu0 %v132, 120
    %v543 = vpop.permute.xlu0 %542
    %544 = vrot.lane.b32.xlu0 %v128, 88
    %v545 = vpop.permute.xlu0 %544
    %v546 = vsel %vm136, %v543, 0
    %v548 = vsel %vm136, %v545, 0
    %550 = vmatprep.subr.mxu0 0.0
    %551 = vmatpush1.xpose.msra.mxu0 %v548
    %552 = vmatprep.subr.mxu0 0.0
    %553 = vmatpush1.xpose.msra.mxu0 0.0
    %554 = vmatprep.subr.mxu0 0.0
    %555 = vmatpush1.xpose.msra.mxu0 0.0
    %556 = vmatprep.subr.mxu0 0.0
    %557 = vmatpush1.xpose.msra.mxu0 0.0
    %558 = vmatprep.subr.mxu0 0.0
    %559 = vmatpush1.xpose.msra.mxu0 0.0
    %560 = vmatprep.subr.mxu0 0.0
    %561 = vmatpush1.xpose.msra.mxu0 0.0
    %562 = vmatprep.subr.mxu0 0.0
    %563 = vmatpush1.xpose.msra.mxu0 0.0
    %564 = vmatprep.subr.mxu0 0.0
    %565 = vmatpush1.xpose.msra.mxu0 0.0
    %566 = vmatprep.subr.mxu0 0.0
    %567 = vmatpush1.xpose.msra.mxu0 0.0
    %568 = vmatprep.subr.mxu0 0.0
    %569 = vmatpush1.xpose.msra.mxu0 0.0
    %570 = vmatprep.subr.mxu0 0.0
    %571 = vmatpush1.xpose.msra.mxu0 0.0
    %572 = vmatprep.subr.mxu0 0.0
    %573 = vmatpush1.xpose.msra.mxu0 0.0
    %574 = vmatprep.subr.mxu0 0.0
    %575 = vmatpush1.xpose.msra.mxu0 0.0
    %576 = vmatprep.subr.mxu0 0.0
    %577 = vmatpush1.xpose.msra.mxu0 0.0
    %578 = vmatprep.subr.mxu0 0.0
    %579 = vmatpush1.xpose.msra.mxu0 0.0
    %580 = vmatprep.subr.mxu0 0.0
    %581 = vmatpush1.xpose.msra.mxu0 0.0
    %582 = vmatprep.subr.mxu0 0.0
    %583 = vmatpush1.xpose.msra.mxu0 0.0
    %584 = vmatprep.subr.mxu0 0.0
    %585 = vmatpush1.xpose.msra.mxu0 0.0
    %586 = vmatprep.subr.mxu0 0.0
    %587 = vmatpush1.xpose.msra.mxu0 0.0
    %588 = vmatprep.subr.mxu0 0.0
    %589 = vmatpush1.xpose.msra.mxu0 0.0
    %590 = vmatprep.subr.mxu0 0.0
    %591 = vmatpush1.xpose.msra.mxu0 0.0
    %592 = vmatprep.subr.mxu0 0.0
    %593 = vmatpush1.xpose.msra.mxu0 0.0
    %594 = vmatprep.subr.mxu0 0.0
    %595 = vmatpush1.xpose.msra.mxu0 0.0
    %596 = vmatprep.subr.mxu0 0.0
    %597 = vmatpush1.xpose.msra.mxu0 0.0
    %598 = vmatprep.subr.mxu0 0.0
    %599 = vmatpush1.xpose.msra.mxu0 0.0
    %600 = vmatprep.subr.mxu0 0.0
    %601 = vmatpush1.xpose.msra.mxu0 0.0
    %602 = vmatprep.subr.mxu0 0.0
    %603 = vmatpush1.xpose.msra.mxu0 0.0
    %604 = vmatprep.subr.mxu0 0.0
    %605 = vmatpush1.xpose.msra.mxu0 0.0
    %606 = vmatprep.subr.mxu0 0.0
    %607 = vmatpush1.xpose.msra.mxu0 0.0
    %608 = vmatprep.subr.mxu0 0.0
    %609 = vmatpush1.xpose.msra.mxu0 0.0
    %610 = vmatprep.subr.mxu0 0.0
    %611 = vmatpush1.xpose.msra.mxu0 0.0
    %612 = vmatprep.subr.mxu0 0.0
    %613 = vmatpush1.xpose.msra.mxu0 0.0
    %614 = vmatprep.mubr.f32.mxu0 0.0
    %615 = vmatmul.mubr.f32.gmra.mrb[0].mxu0 %v546
    %v616 = vpop.f32.mrb[0].mxu0
    %v617 = vadd.f32 0.0, %v616
    %v618 = vpop.f32.mrb[0].mxu0
    %619 = vdwg.mxu0
    %v620 = vsel %vm136, %v539, -inf
    %621 = vmax.xlane.f32.xlu0 %v620
    %v622 = vpop.xlane.xlu0 %621
    %v623 = vsel %vm136, %v617, -inf
    %624 = vmax.xlane.f32.xlu0 %v623
    %v625 = vpop.xlane.xlu0 %624
    %v626 = vsub.f32 %v539, %v622
    %v627 = vsub.f32 %v617, %v625
    %v628 = vmul.f32 %v626, 1.442695
    %v629 = vpow.pop %v628
    %v630 = vmul.f32 %v627, 1.442695
    %v631 = vpow.pop %v630
    %v632 = vsel %vm136, %v629, 0.0
    %633 = vadd.xlane.f32.xlu0 %v632
    %v634 = vpop.xlane.xlu0 %633
    %v635 = vsel %vm136, %v631, 0.0
    %636 = vadd.xlane.f32.xlu0 %v635
    %v637 = vpop.xlane.xlu0 %636
    %v638 = vrcp.pop %v634
    %v639 = vrcp.pop %v637
    %v640 = vmul.f32 %v629, %v638
    %v641 = vmul.f32 %v631, %v639
    %642 = vrot.lane.b32.xlu0 %v125, 56
    %v643 = vpop.permute.xlu0 %642
    %v646 = vsel %vm136, %v640, 0
    %648 = vmatprep.subr.mxu0 0.0
    %649 = vmatpush1.msra.mxu0 %v643
    %650 = vmatprep.subr.mxu0 0.0
    %651 = vmatpush1.msra.mxu0 0.0
    %652 = vmatprep.subr.mxu0 0.0
    %653 = vmatpush1.msra.mxu0 0.0
    %654 = vmatprep.subr.mxu0 0.0
    %655 = vmatpush1.msra.mxu0 0.0
    %656 = vmatprep.subr.mxu0 0.0
    %657 = vmatpush1.msra.mxu0 0.0
    %658 = vmatprep.subr.mxu0 0.0
    %659 = vmatpush1.msra.mxu0 0.0
    %660 = vmatprep.subr.mxu0 0.0
    %661 = vmatpush1.msra.mxu0 0.0
    %662 = vmatprep.subr.mxu0 0.0
    %663 = vmatpush1.msra.mxu0 0.0
    %664 = vmatprep.subr.mxu0 0.0
    %665 = vmatpush1.msra.mxu0 0.0
    %666 = vmatprep.subr.mxu0 0.0
    %667 = vmatpush1.msra.mxu0 0.0
    %668 = vmatprep.subr.mxu0 0.0
    %669 = vmatpush1.msra.mxu0 0.0
    %670 = vmatprep.subr.mxu0 0.0
    %671 = vmatpush1.msra.mxu0 0.0
    %672 = vmatprep.subr.mxu0 0.0
    %673 = vmatpush1.msra.mxu0 0.0
    %674 = vmatprep.subr.mxu0 0.0
    %675 = vmatpush1.msra.mxu0 0.0
    %676 = vmatprep.subr.mxu0 0.0
    %677 = vmatpush1.msra.mxu0 0.0
    %678 = vmatprep.subr.mxu0 0.0
    %679 = vmatpush1.msra.mxu0 0.0
    %680 = vmatprep.subr.mxu0 0.0
    %681 = vmatpush1.msra.mxu0 0.0
    %682 = vmatprep.subr.mxu0 0.0
    %683 = vmatpush1.msra.mxu0 0.0
    %684 = vmatprep.subr.mxu0 0.0
    %685 = vmatpush1.msra.mxu0 0.0
    %686 = vmatprep.subr.mxu0 0.0
    %687 = vmatpush1.msra.mxu0 0.0
    %688 = vmatprep.subr.mxu0 0.0
    %689 = vmatpush1.msra.mxu0 0.0
    %690 = vmatprep.subr.mxu0 0.0
    %691 = vmatpush1.msra.mxu0 0.0
    %692 = vmatprep.subr.mxu0 0.0
    %693 = vmatpush1.msra.mxu0 0.0
    %694 = vmatprep.subr.mxu0 0.0
    %695 = vmatpush1.msra.mxu0 0.0
    %696 = vmatprep.subr.mxu0 0.0
    %697 = vmatpush1.msra.mxu0 0.0
    %698 = vmatprep.subr.mxu0 0.0
    %699 = vmatpush1.msra.mxu0 0.0
    %700 = vmatprep.subr.mxu0 0.0
    %701 = vmatpush1.msra.mxu0 0.0
    %702 = vmatprep.subr.mxu0 0.0
    %703 = vmatpush1.msra.mxu0 0.0
    %704 = vmatprep.subr.mxu0 0.0
    %705 = vmatpush1.msra.mxu0 0.0
    %706 = vmatprep.subr.mxu0 0.0
    %707 = vmatpush1.msra.mxu0 0.0
    %708 = vmatprep.subr.mxu0 0.0
    %709 = vmatpush1.msra.mxu0 0.0
    %710 = vmatprep.subr.mxu0 0.0
    %711 = vmatpush1.msra.mxu0 0.0
    %712 = vmatprep.mubr.f32.mxu0 0.0
    %713 = vmatmul.mubr.f32.gmra.mrb[0].mxu0 %v646
    %v714 = vpop.f32.mrb[0].mxu0
    %v715 = vadd.f32 0.0, %v714
    %v716 = vpop.f32.mrb[0].mxu0
    %717 = vdwg.mxu0
    %718 = vrot.lane.b32.xlu0 %v128, 56
    %v719 = vpop.permute.xlu0 %718
    %v722 = vsel %vm136, %v641, 0
    %724 = vmatprep.subr.mxu0 0.0
    %725 = vmatpush1.msra.mxu0 %v719
    %726 = vmatprep.subr.mxu0 0.0
    %727 = vmatpush1.msra.mxu0 0.0
    %728 = vmatprep.subr.mxu0 0.0
    %729 = vmatpush1.msra.mxu0 0.0
    %730 = vmatprep.subr.mxu0 0.0
    %731 = vmatpush1.msra.mxu0 0.0
    %732 = vmatprep.subr.mxu0 0.0
    %733 = vmatpush1.msra.mxu0 0.0
    %734 = vmatprep.subr.mxu0 0.0
    %735 = vmatpush1.msra.mxu0 0.0
    %736 = vmatprep.subr.mxu0 0.0
    %737 = vmatpush1.msra.mxu0 0.0
    %738 = vmatprep.subr.mxu0 0.0
    %739 = vmatpush1.msra.mxu0 0.0
    %740 = vmatprep.subr.mxu0 0.0
    %741 = vmatpush1.msra.mxu0 0.0
    %742 = vmatprep.subr.mxu0 0.0
    %743 = vmatpush1.msra.mxu0 0.0
    %744 = vmatprep.subr.mxu0 0.0
    %745 = vmatpush1.msra.mxu0 0.0
    %746 = vmatprep.subr.mxu0 0.0
    %747 = vmatpush1.msra.mxu0 0.0
    %748 = vmatprep.subr.mxu0 0.0
    %749 = vmatpush1.msra.mxu0 0.0
    %750 = vmatprep.subr.mxu0 0.0
    %751 = vmatpush1.msra.mxu0 0.0
    %752 = vmatprep.subr.mxu0 0.0
    %753 = vmatpush1.msra.mxu0 0.0
    %754 = vmatprep.subr.mxu0 0.0
    %755 = vmatpush1.msra.mxu0 0.0
    %756 = vmatprep.subr.mxu0 0.0
    %757 = vmatpush1.msra.mxu0 0.0
    %758 = vmatprep.subr.mxu0 0.0
    %759 = vmatpush1.msra.mxu0 0.0
    %760 = vmatprep.subr.mxu0 0.0
    %761 = vmatpush1.msra.mxu0 0.0
    %762 = vmatprep.subr.mxu0 0.0
    %763 = vmatpush1.msra.mxu0 0.0
    %764 = vmatprep.subr.mxu0 0.0
    %765 = vmatpush1.msra.mxu0 0.0
    %766 = vmatprep.subr.mxu0 0.0
    %767 = vmatpush1.msra.mxu0 0.0
    %768 = vmatprep.subr.mxu0 0.0
    %769 = vmatpush1.msra.mxu0 0.0
    %770 = vmatprep.subr.mxu0 0.0
    %771 = vmatpush1.msra.mxu0 0.0
    %772 = vmatprep.subr.mxu0 0.0
    %773 = vmatpush1.msra.mxu0 0.0
    %774 = vmatprep.subr.mxu0 0.0
    %775 = vmatpush1.msra.mxu0 0.0
    %776 = vmatprep.subr.mxu0 0.0
    %777 = vmatpush1.msra.mxu0 0.0
    %778 = vmatprep.subr.mxu0 0.0
    %779 = vmatpush1.msra.mxu0 0.0
    %780 = vmatprep.subr.mxu0 0.0
    %781 = vmatpush1.msra.mxu0 0.0
    %782 = vmatprep.subr.mxu0 0.0
    %783 = vmatpush1.msra.mxu0 0.0
    %784 = vmatprep.subr.mxu0 0.0
    %785 = vmatpush1.msra.mxu0 0.0
    %786 = vmatprep.subr.mxu0 0.0
    %787 = vmatpush1.msra.mxu0 0.0
    %788 = vmatprep.mubr.f32.mxu0 0.0
    %789 = vmatmul.mubr.f32.gmra.mrb[0].mxu0 %v722
    %v790 = vpop.f32.mrb[0].mxu0
    %v791 = vadd.f32 0.0, %v790
    %v792 = vpop.f32.mrb[0].mxu0
    %793 = vdwg.mxu0
    %794 = vrot.lane.b32.xlu0 %v131, 112
    %v795 = vpop.permute.xlu0 %794
    %796 = vrot.lane.b32.xlu0 %v125, 80
    %v797 = vpop.permute.xlu0 %796
    %v798 = vsel %vm136, %v795, 0
    %v800 = vsel %vm136, %v797, 0
    %802 = vmatprep.subr.mxu0 0.0
    %803 = vmatpush1.xpose.msra.mxu0 %v800
    %804 = vmatprep.subr.mxu0 0.0
    %805 = vmatpush1.xpose.msra.mxu0 0.0
    %806 = vmatprep.subr.mxu0 0.0
    %807 = vmatpush1.xpose.msra.mxu0 0.0
    %808 = vmatprep.subr.mxu0 0.0
    %809 = vmatpush1.xpose.msra.mxu0 0.0
    %810 = vmatprep.subr.mxu0 0.0
    %811 = vmatpush1.xpose.msra.mxu0 0.0
    %812 = vmatprep.subr.mxu0 0.0
    %813 = vmatpush1.xpose.msra.mxu0 0.0
    %814 = vmatprep.subr.mxu0 0.0
    %815 = vmatpush1.xpose.msra.mxu0 0.0
    %816 = vmatprep.subr.mxu0 0.0
    %817 = vmatpush1.xpose.msra.mxu0 0.0
    %818 = vmatprep.subr.mxu0 0.0
    %819 = vmatpush1.xpose.msra.mxu0 0.0
    %820 = vmatprep.subr.mxu0 0.0
    %821 = vmatpush1.xpose.msra.mxu0 0.0
    %822 = vmatprep.subr.mxu0 0.0
    %823 = vmatpush1.xpose.msra.mxu0 0.0
    %824 = vmatprep.subr.mxu0 0.0
    %825 = vmatpush1.xpose.msra.mxu0 0.0
    %826 = vmatprep.subr.mxu0 0.0
    %827 = vmatpush1.xpose.msra.mxu0 0.0
    %828 = vmatprep.subr.mxu0 0.0
    %829 = vmatpush1.xpose.msra.mxu0 0.0
    %830 = vmatprep.subr.mxu0 0.0
    %831 = vmatpush1.xpose.msra.mxu0 0.0
    %832 = vmatprep.subr.mxu0 0.0
    %833 = vmatpush1.xpose.msra.mxu0 0.0
    %834 = vmatprep.subr.mxu0 0.0
    %835 = vmatpush1.xpose.msra.mxu0 0.0
    %836 = vmatprep.subr.mxu0 0.0
    %837 = vmatpush1.xpose.msra.mxu0 0.0
    %838 = vmatprep.subr.mxu0 0.0
    %839 = vmatpush1.xpose.msra.mxu0 0.0
    %840 = vmatprep.subr.mxu0 0.0
    %841 = vmatpush1.xpose.msra.mxu0 0.0
    %842 = vmatprep.subr.mxu0 0.0
    %843 = vmatpush1.xpose.msra.mxu0 0.0
    %844 = vmatprep.subr.mxu0 0.0
    %845 = vmatpush1.xpose.msra.mxu0 0.0
    %846 = vmatprep.subr.mxu0 0.0
    %847 = vmatpush1.xpose.msra.mxu0 0.0
    %848 = vmatprep.subr.mxu0 0.0
    %849 = vmatpush1.xpose.msra.mxu0 0.0
    %850 = vmatprep.subr.mxu0 0.0
    %851 = vmatpush1.xpose.msra.mxu0 0.0
    %852 = vmatprep.subr.mxu0 0.0
    %853 = vmatpush1.xpose.msra.mxu0 0.0
    %854 = vmatprep.subr.mxu0 0.0
    %855 = vmatpush1.xpose.msra.mxu0 0.0
    %856 = vmatprep.subr.mxu0 0.0
    %857 = vmatpush1.xpose.msra.mxu0 0.0
    %858 = vmatprep.subr.mxu0 0.0
    %859 = vmatpush1.xpose.msra.mxu0 0.0
    %860 = vmatprep.subr.mxu0 0.0
    %861 = vmatpush1.xpose.msra.mxu0 0.0
    %862 = vmatprep.subr.mxu0 0.0
    %863 = vmatpush1.xpose.msra.mxu0 0.0
    %864 = vmatprep.subr.mxu0 0.0
    %865 = vmatpush1.xpose.msra.mxu0 0.0
    %866 = vmatprep.mubr.f32.mxu0 0.0
    %867 = vmatmul.mubr.f32.gmra.mrb[0].mxu0 %v798
    %v868 = vpop.f32.mrb[0].mxu0
    %v869 = vadd.f32 0.0, %v868
    %v870 = vpop.f32.mrb[0].mxu0
    %871 = vdwg.mxu0
    %872 = vrot.lane.b32.xlu0 %v132, 112
    %v873 = vpop.permute.xlu0 %872
    %874 = vrot.lane.b32.xlu0 %v128, 80
    %v875 = vpop.permute.xlu0 %874
    %v876 = vsel %vm136, %v873, 0
    %v878 = vsel %vm136, %v875, 0
    %880 = vmatprep.subr.mxu0 0.0
    %881 = vmatpush1.xpose.msra.mxu0 %v878
    %882 = vmatprep.subr.mxu0 0.0
    %883 = vmatpush1.xpose.msra.mxu0 0.0
    %884 = vmatprep.subr.mxu0 0.0
    %885 = vmatpush1.xpose.msra.mxu0 0.0
    %886 = vmatprep.subr.mxu0 0.0
    %887 = vmatpush1.xpose.msra.mxu0 0.0
    %888 = vmatprep.subr.mxu0 0.0
    %889 = vmatpush1.xpose.msra.mxu0 0.0
    %890 = vmatprep.subr.mxu0 0.0
    %891 = vmatpush1.xpose.msra.mxu0 0.0
    %892 = vmatprep.subr.mxu0 0.0
    %893 = vmatpush1.xpose.msra.mxu0 0.0
    %894 = vmatprep.subr.mxu0 0.0
    %895 = vmatpush1.xpose.msra.mxu0 0.0
    %896 = vmatprep.subr.mxu0 0.0
    %897 = vmatpush1.xpose.msra.mxu0 0.0
    %898 = vmatprep.subr.mxu0 0.0
    %899 = vmatpush1.xpose.msra.mxu0 0.0
    %900 = vmatprep.subr.mxu0 0.0
    %901 = vmatpush1.xpose.msra.mxu0 0.0
    %902 = vmatprep.subr.mxu0 0.0
    %903 = vmatpush1.xpose.msra.mxu0 0.0
    %904 = vmatprep.subr.mxu0 0.0
    %905 = vmatpush1.xpose.msra.mxu0 0.0
    %906 = vmatprep.subr.mxu0 0.0
    %907 = vmatpush1.xpose.msra.mxu0 0.0
    %908 = vmatprep.subr.mxu0 0.0
    %909 = vmatpush1.xpose.msra.mxu0 0.0
    %910 = vmatprep.subr.mxu0 0.0
    %911 = vmatpush1.xpose.msra.mxu0 0.0
    %912 = vmatprep.subr.mxu0 0.0
    %913 = vmatpush1.xpose.msra.mxu0 0.0
    %914 = vmatprep.subr.mxu0 0.0
    %915 = vmatpush1.xpose.msra.mxu0 0.0
    %916 = vmatprep.subr.mxu0 0.0
    %917 = vmatpush1.xpose.msra.mxu0 0.0
    %918 = vmatprep.subr.mxu0 0.0
    %919 = vmatpush1.xpose.msra.mxu0 0.0
    %920 = vmatprep.subr.mxu0 0.0
    %921 = vmatpush1.xpose.msra.mxu0 0.0
    %922 = vmatprep.subr.mxu0 0.0
    %923 = vmatpush1.xpose.msra.mxu0 0.0
    %924 = vmatprep.subr.mxu0 0.0
    %925 = vmatpush1.xpose.msra.mxu0 0.0
    %926 = vmatprep.subr.mxu0 0.0
    %927 = vmatpush1.xpose.msra.mxu0 0.0
    %928 = vmatprep.subr.mxu0 0.0
    %929 = vmatpush1.xpose.msra.mxu0 0.0
    %930 = vmatprep.subr.mxu0 0.0
    %931 = vmatpush1.xpose.msra.mxu0 0.0
    %932 = vmatprep.subr.mxu0 0.0
    %933 = vmatpush1.xpose.msra.mxu0 0.0
    %934 = vmatprep.subr.mxu0 0.0
    %935 = vmatpush1.xpose.msra.mxu0 0.0
    %936 = vmatprep.subr.mxu0 0.0
    %937 = vmatpush1.xpose.msra.mxu0 0.0
    %938 = vmatprep.subr.mxu0 0.0
    %939 = vmatpush1.xpose.msra.mxu0 0.0
    %940 = vmatprep.subr.mxu0 0.0
    %941 = vmatpush1.xpose.msra.mxu0 0.0
    %942 = vmatprep.subr.mxu0 0.0
    %943 = vmatpush1.xpose.msra.mxu0 0.0
    %944 = vmatprep.mubr.f32.mxu0 0.0
    %945 = vmatmul.mubr.f32.gmra.mrb[0].mxu0 %v876
    %v946 = vpop.f32.mrb[0].mxu0
    %v947 = vadd.f32 0.0, %v946
    %v948 = vpop.f32.mrb[0].mxu0
    %949 = vdwg.mxu0
    %v950 = vsel %vm136, %v869, -inf
    %951 = vmax.xlane.f32.xlu0 %v950
    %v952 = vpop.xlane.xlu0 %951
    %v953 = vsel %vm136, %v947, -inf
    %954 = vmax.xlane.f32.xlu0 %v953
    %v955 = vpop.xlane.xlu0 %954
    %v956 = vsub.f32 %v869, %v952
    %v957 = vsub.f32 %v947, %v955
    %v958 = vmul.f32 %v956, 1.442695
    %v959 = vpow.pop %v958
    %v960 = vmul.f32 %v957, 1.442695
    %v961 = vpow.pop %v960
    %v962 = vsel %vm136, %v959, 0.0
    %963 = vadd.xlane.f32.xlu0 %v962
    %v964 = vpop.xlane.xlu0 %963
    %v965 = vsel %vm136, %v961, 0.0
    %966 = vadd.xlane.f32.xlu0 %v965
    %v967 = vpop.xlane.xlu0 %966
    %v968 = vrcp.pop %v964
    %v969 = vrcp.pop %v967
    %v970 = vmul.f32 %v959, %v968
    %v971 = vmul.f32 %v961, %v969
    %972 = vrot.lane.b32.xlu0 %v125, 48
    %v973 = vpop.permute.xlu0 %972
    %v976 = vsel %vm136, %v970, 0
    %978 = vmatprep.subr.mxu0 0.0
    %979 = vmatpush1.msra.mxu0 %v973
    %980 = vmatprep.subr.mxu0 0.0
    %981 = vmatpush1.msra.mxu0 0.0
    %982 = vmatprep.subr.mxu0 0.0
    %983 = vmatpush1.msra.mxu0 0.0
    %984 = vmatprep.subr.mxu0 0.0
    %985 = vmatpush1.msra.mxu0 0.0
    %986 = vmatprep.subr.mxu0 0.0
    %987 = vmatpush1.msra.mxu0 0.0
    %988 = vmatprep.subr.mxu0 0.0
    %989 = vmatpush1.msra.mxu0 0.0
    %990 = vmatprep.subr.mxu0 0.0
    %991 = vmatpush1.msra.mxu0 0.0
    %992 = vmatprep.subr.mxu0 0.0
    %993 = vmatpush1.msra.mxu0 0.0
    %994 = vmatprep.subr.mxu0 0.0
    %995 = vmatpush1.msra.mxu0 0.0
    %996 = vmatprep.subr.mxu0 0.0
    %997 = vmatpush1.msra.mxu0 0.0
    %998 = vmatprep.subr.mxu0 0.0
    %999 = vmatpush1.msra.mxu0 0.0
    %1000 = vmatprep.subr.mxu0 0.0
    %1001 = vmatpush1.msra.mxu0 0.0
    %1002 = vmatprep.subr.mxu0 0.0
    %1003 = vmatpush1.msra.mxu0 0.0
    %1004 = vmatprep.subr.mxu0 0.0
    %1005 = vmatpush1.msra.mxu0 0.0
    %1006 = vmatprep.subr.mxu0 0.0
    %1007 = vmatpush1.msra.mxu0 0.0
    %1008 = vmatprep.subr.mxu0 0.0
    %1009 = vmatpush1.msra.mxu0 0.0
    %1010 = vmatprep.subr.mxu0 0.0
    %1011 = vmatpush1.msra.mxu0 0.0
    %1012 = vmatprep.subr.mxu0 0.0
    %1013 = vmatpush1.msra.mxu0 0.0
    %1014 = vmatprep.subr.mxu0 0.0
    %1015 = vmatpush1.msra.mxu0 0.0
    %1016 = vmatprep.subr.mxu0 0.0
    %1017 = vmatpush1.msra.mxu0 0.0
    %1018 = vmatprep.subr.mxu0 0.0
    %1019 = vmatpush1.msra.mxu0 0.0
    %1020 = vmatprep.subr.mxu0 0.0
    %1021 = vmatpush1.msra.mxu0 0.0
    %1022 = vmatprep.subr.mxu0 0.0
    %1023 = vmatpush1.msra.mxu0 0.0
    %1024 = vmatprep.subr.mxu0 0.0
    %1025 = vmatpush1.msra.mxu0 0.0
    %1026 = vmatprep.subr.mxu0 0.0
    %1027 = vmatpush1.msra.mxu0 0.0
    %1028 = vmatprep.subr.mxu0 0.0
    %1029 = vmatpush1.msra.mxu0 0.0
    %1030 = vmatprep.subr.mxu0 0.0
    %1031 = vmatpush1.msra.mxu0 0.0
    %1032 = vmatprep.subr.mxu0 0.0
    %1033 = vmatpush1.msra.mxu0 0.0
    %1034 = vmatprep.subr.mxu0 0.0
    %1035 = vmatpush1.msra.mxu0 0.0
    %1036 = vmatprep.subr.mxu0 0.0
    %1037 = vmatpush1.msra.mxu0 0.0
    %1038 = vmatprep.subr.mxu0 0.0
    %1039 = vmatpush1.msra.mxu0 0.0
    %1040 = vmatprep.subr.mxu0 0.0
    %1041 = vmatpush1.msra.mxu0 0.0
    %1042 = vmatprep.mubr.f32.mxu0 0.0
    %1043 = vmatmul.mubr.f32.gmra.mrb[0].mxu0 %v976
    %v1044 = vpop.f32.mrb[0].mxu0
    %v1045 = vadd.f32 0.0, %v1044
    %v1046 = vpop.f32.mrb[0].mxu0
    %1047 = vdwg.mxu0
    %1048 = vrot.lane.b32.xlu0 %v128, 48
    %v1049 = vpop.permute.xlu0 %1048
    %v1052 = vsel %vm136, %v971, 0
    %1054 = vmatprep.subr.mxu0 0.0
    %1055 = vmatpush1.msra.mxu0 %v1049
    %1056 = vmatprep.subr.mxu0 0.0
    %1057 = vmatpush1.msra.mxu0 0.0
    %1058 = vmatprep.subr.mxu0 0.0
    %1059 = vmatpush1.msra.mxu0 0.0
    %1060 = vmatprep.subr.mxu0 0.0
    %1061 = vmatpush1.msra.mxu0 0.0
    %1062 = vmatprep.subr.mxu0 0.0
    %1063 = vmatpush1.msra.mxu0 0.0
    %1064 = vmatprep.subr.mxu0 0.0
    %1065 = vmatpush1.msra.mxu0 0.0
    %1066 = vmatprep.subr.mxu0 0.0
    %1067 = vmatpush1.msra.mxu0 0.0
    %1068 = vmatprep.subr.mxu0 0.0
    %1069 = vmatpush1.msra.mxu0 0.0
    %1070 = vmatprep.subr.mxu0 0.0
    %1071 = vmatpush1.msra.mxu0 0.0
    %1072 = vmatprep.subr.mxu0 0.0
    %1073 = vmatpush1.msra.mxu0 0.0
    %1074 = vmatprep.subr.mxu0 0.0
    %1075 = vmatpush1.msra.mxu0 0.0
    %1076 = vmatprep.subr.mxu0 0.0
    %1077 = vmatpush1.msra.mxu0 0.0
    %1078 = vmatprep.subr.mxu0 0.0
    %1079 = vmatpush1.msra.mxu0 0.0
    %1080 = vmatprep.subr.mxu0 0.0
    %1081 = vmatpush1.msra.mxu0 0.0
    %1082 = vmatprep.subr.mxu0 0.0
    %1083 = vmatpush1.msra.mxu0 0.0
    %1084 = vmatprep.subr.mxu0 0.0
    %1085 = vmatpush1.msra.mxu0 0.0
    %1086 = vmatprep.subr.mxu0 0.0
    %1087 = vmatpush1.msra.mxu0 0.0
    %1088 = vmatprep.subr.mxu0 0.0
    %1089 = vmatpush1.msra.mxu0 0.0
    %1090 = vmatprep.subr.mxu0 0.0
    %1091 = vmatpush1.msra.mxu0 0.0
    %1092 = vmatprep.subr.mxu0 0.0
    %1093 = vmatpush1.msra.mxu0 0.0
    %1094 = vmatprep.subr.mxu0 0.0
    %1095 = vmatpush1.msra.mxu0 0.0
    %1096 = vmatprep.subr.mxu0 0.0
    %1097 = vmatpush1.msra.mxu0 0.0
    %1098 = vmatprep.subr.mxu0 0.0
    %1099 = vmatpush1.msra.mxu0 0.0
    %1100 = vmatprep.subr.mxu0 0.0
    %1101 = vmatpush1.msra.mxu0 0.0
    %1102 = vmatprep.subr.mxu0 0.0
    %1103 = vmatpush1.msra.mxu0 0.0
    %1104 = vmatprep.subr.mxu0 0.0
    %1105 = vmatpush1.msra.mxu0 0.0
    %1106 = vmatprep.subr.mxu0 0.0
    %1107 = vmatpush1.msra.mxu0 0.0
    %1108 = vmatprep.subr.mxu0 0.0
    %1109 = vmatpush1.msra.mxu0 0.0
    %1110 = vmatprep.subr.mxu0 0.0
    %1111 = vmatpush1.msra.mxu0 0.0
    %1112 = vmatprep.subr.mxu0 0.0
    %1113 = vmatpush1.msra.mxu0 0.0
    %1114 = vmatprep.subr.mxu0 0.0
    %1115 = vmatpush1.msra.mxu0 0.0
    %1116 = vmatprep.subr.mxu0 0.0
    %1117 = vmatpush1.msra.mxu0 0.0
    %1118 = vmatprep.mubr.f32.mxu0 0.0
    %1119 = vmatmul.mubr.f32.gmra.mrb[0].mxu0 %v1052
    %v1120 = vpop.f32.mrb[0].mxu0
    %v1121 = vadd.f32 0.0, %v1120
    %v1122 = vpop.f32.mrb[0].mxu0
    %1123 = vdwg.mxu0
    %1124 = vrot.lane.b32.xlu0 %v131, 104
    %v1125 = vpop.permute.xlu0 %1124
    %1126 = vrot.lane.b32.xlu0 %v125, 72
    %v1127 = vpop.permute.xlu0 %1126
    %v1128 = vsel %vm136, %v1125, 0
    %v1130 = vsel %vm136, %v1127, 0
    %1132 = vmatprep.subr.mxu0 0.0
    %1133 = vmatpush1.xpose.msra.mxu0 %v1130
    %1134 = vmatprep.subr.mxu0 0.0
    %1135 = vmatpush1.xpose.msra.mxu0 0.0
    %1136 = vmatprep.subr.mxu0 0.0
    %1137 = vmatpush1.xpose.msra.mxu0 0.0
    %1138 = vmatprep.subr.mxu0 0.0
    %1139 = vmatpush1.xpose.msra.mxu0 0.0
    %1140 = vmatprep.subr.mxu0 0.0
    %1141 = vmatpush1.xpose.msra.mxu0 0.0
    %1142 = vmatprep.subr.mxu0 0.0
    %1143 = vmatpush1.xpose.msra.mxu0 0.0
    %1144 = vmatprep.subr.mxu0 0.0
    %1145 = vmatpush1.xpose.msra.mxu0 0.0
    %1146 = vmatprep.subr.mxu0 0.0
    %1147 = vmatpush1.xpose.msra.mxu0 0.0
    %1148 = vmatprep.subr.mxu0 0.0
    %1149 = vmatpush1.xpose.msra.mxu0 0.0
    %1150 = vmatprep.subr.mxu0 0.0
    %1151 = vmatpush1.xpose.msra.mxu0 0.0
    %1152 = vmatprep.subr.mxu0 0.0
    %1153 = vmatpush1.xpose.msra.mxu0 0.0
    %1154 = vmatprep.subr.mxu0 0.0
    %1155 = vmatpush1.xpose.msra.mxu0 0.0
    %1156 = vmatprep.subr.mxu0 0.0
    %1157 = vmatpush1.xpose.msra.mxu0 0.0
    %1158 = vmatprep.subr.mxu0 0.0
    %1159 = vmatpush1.xpose.msra.mxu0 0.0
    %1160 = vmatprep.subr.mxu0 0.0
    %1161 = vmatpush1.xpose.msra.mxu0 0.0
    %1162 = vmatprep.subr.mxu0 0.0
    %1163 = vmatpush1.xpose.msra.mxu0 0.0
    %1164 = vmatprep.subr.mxu0 0.0
    %1165 = vmatpush1.xpose.msra.mxu0 0.0
    %1166 = vmatprep.subr.mxu0 0.0
    %1167 = vmatpush1.xpose.msra.mxu0 0.0
    %1168 = vmatprep.subr.mxu0 0.0
    %1169 = vmatpush1.xpose.msra.mxu0 0.0
    %1170 = vmatprep.subr.mxu0 0.0
    %1171 = vmatpush1.xpose.msra.mxu0 0.0
    %1172 = vmatprep.subr.mxu0 0.0
    %1173 = vmatpush1.xpose.msra.mxu0 0.0
    %1174 = vmatprep.subr.mxu0 0.0
    %1175 = vmatpush1.xpose.msra.mxu0 0.0
    %1176 = vmatprep.subr.mxu0 0.0
    %1177 = vmatpush1.xpose.msra.mxu0 0.0
    %1178 = vmatprep.subr.mxu0 0.0
    %1179 = vmatpush1.xpose.msra.mxu0 0.0
    %1180 = vmatprep.subr.mxu0 0.0
    %1181 = vmatpush1.xpose.msra.mxu0 0.0
    %1182 = vmatprep.subr.mxu0 0.0
    %1183 = vmatpush1.xpose.msra.mxu0 0.0
    %1184 = vmatprep.subr.mxu0 0.0
    %1185 = vmatpush1.xpose.msra.mxu0 0.0
    %1186 = vmatprep.subr.mxu0 0.0
    %1187 = vmatpush1.xpose.msra.mxu0 0.0
    %1188 = vmatprep.subr.mxu0 0.0
    %1189 = vmatpush1.xpose.msra.mxu0 0.0
    %1190 = vmatprep.subr.mxu0 0.0
    %1191 = vmatpush1.xpose.msra.mxu0 0.0
    %1192 = vmatprep.subr.mxu0 0.0
    %1193 = vmatpush1.xpose.msra.mxu0 0.0
    %1194 = vmatprep.subr.mxu0 0.0
    %1195 = vmatpush1.xpose.msra.mxu0 0.0
    %1196 = vmatprep.mubr.f32.mxu0 0.0
    %1197 = vmatmul.mubr.f32.gmra.mrb[0].mxu0 %v1128
    %v1198 = vpop.f32.mrb[0].mxu0
    %v1199 = vadd.f32 0.0, %v1198
    %v1200 = vpop.f32.mrb[0].mxu0
    %1201 = vdwg.mxu0
    %1202 = vrot.lane.b32.xlu0 %v132, 104
    %v1203 = vpop.permute.xlu0 %1202
    %1204 = vrot.lane.b32.xlu0 %v128, 72
    %v1205 = vpop.permute.xlu0 %1204
    %v1206 = vsel %vm136, %v1203, 0
    %v1208 = vsel %vm136, %v1205, 0
    %1210 = vmatprep.subr.mxu0 0.0
    %1211 = vmatpush1.xpose.msra.mxu0 %v1208
    %1212 = vmatprep.subr.mxu0 0.0
    %1213 = vmatpush1.xpose.msra.mxu0 0.0
    %1214 = vmatprep.subr.mxu0 0.0
    %1215 = vmatpush1.xpose.msra.mxu0 0.0
    %1216 = vmatprep.subr.mxu0 0.0
    %1217 = vmatpush1.xpose.msra.mxu0 0.0
    %1218 = vmatprep.subr.mxu0 0.0
    %1219 = vmatpush1.xpose.msra.mxu0 0.0
    %1220 = vmatprep.subr.mxu0 0.0
    %1221 = vmatpush1.xpose.msra.mxu0 0.0
    %1222 = vmatprep.subr.mxu0 0.0
    %1223 = vmatpush1.xpose.msra.mxu0 0.0
    %1224 = vmatprep.subr.mxu0 0.0
    %1225 = vmatpush1.xpose.msra.mxu0 0.0
    %1226 = vmatprep.subr.mxu0 0.0
    %1227 = vmatpush1.xpose.msra.mxu0 0.0
    %1228 = vmatprep.subr.mxu0 0.0
    %1229 = vmatpush1.xpose.msra.mxu0 0.0
    %1230 = vmatprep.subr.mxu0 0.0
    %1231 = vmatpush1.xpose.msra.mxu0 0.0
    %1232 = vmatprep.subr.mxu0 0.0
    %1233 = vmatpush1.xpose.msra.mxu0 0.0
    %1234 = vmatprep.subr.mxu0 0.0
    %1235 = vmatpush1.xpose.msra.mxu0 0.0
    %1236 = vmatprep.subr.mxu0 0.0
    %1237 = vmatpush1.xpose.msra.mxu0 0.0
    %1238 = vmatprep.subr.mxu0 0.0
    %1239 = vmatpush1.xpose.msra.mxu0 0.0
    %1240 = vmatprep.subr.mxu0 0.0
    %1241 = vmatpush1.xpose.msra.mxu0 0.0
    %1242 = vmatprep.subr.mxu0 0.0
    %1243 = vmatpush1.xpose.msra.mxu0 0.0
    %1244 = vmatprep.subr.mxu0 0.0
    %1245 = vmatpush1.xpose.msra.mxu0 0.0
    %1246 = vmatprep.subr.mxu0 0.0
    %1247 = vmatpush1.xpose.msra.mxu0 0.0
    %1248 = vmatprep.subr.mxu0 0.0
    %1249 = vmatpush1.xpose.msra.mxu0 0.0
    %1250 = vmatprep.subr.mxu0 0.0
    %1251 = vmatpush1.xpose.msra.mxu0 0.0
    %1252 = vmatprep.subr.mxu0 0.0
    %1253 = vmatpush1.xpose.msra.mxu0 0.0
    %1254 = vmatprep.subr.mxu0 0.0
    %1255 = vmatpush1.xpose.msra.mxu0 0.0
    %1256 = vmatprep.subr.mxu0 0.0
    %1257 = vmatpush1.xpose.msra.mxu0 0.0
    %1258 = vmatprep.subr.mxu0 0.0
    %1259 = vmatpush1.xpose.msra.mxu0 0.0
    %1260 = vmatprep.subr.mxu0 0.0
    %1261 = vmatpush1.xpose.msra.mxu0 0.0
    %1262 = vmatprep.subr.mxu0 0.0
    %1263 = vmatpush1.xpose.msra.mxu0 0.0
    %1264 = vmatprep.subr.mxu0 0.0
    %1265 = vmatpush1.xpose.msra.mxu0 0.0
    %1266 = vmatprep.subr.mxu0 0.0
    %1267 = vmatpush1.xpose.msra.mxu0 0.0
    %1268 = vmatprep.subr.mxu0 0.0
    %1269 = vmatpush1.xpose.msra.mxu0 0.0
    %1270 = vmatprep.subr.mxu0 0.0
    %1271 = vmatpush1.xpose.msra.mxu0 0.0
    %1272 = vmatprep.subr.mxu0 0.0
    %1273 = vmatpush1.xpose.msra.mxu0 0.0
    %1274 = vmatprep.mubr.f32.mxu0 0.0
    %1275 = vmatmul.mubr.f32.gmra.mrb[0].mxu0 %v1206
    %v1276 = vpop.f32.mrb[0].mxu0
    %v1277 = vadd.f32 0.0, %v1276
    %v1278 = vpop.f32.mrb[0].mxu0
    %1279 = vdwg.mxu0
    %v1280 = vsel %vm136, %v1199, -inf
    %1281 = vmax.xlane.f32.xlu0 %v1280
    %v1282 = vpop.xlane.xlu0 %1281
    %v1283 = vsel %vm136, %v1277, -inf
    %1284 = vmax.xlane.f32.xlu0 %v1283
    %v1285 = vpop.xlane.xlu0 %1284
    %v1286 = vsub.f32 %v1199, %v1282
    %v1287 = vsub.f32 %v1277, %v1285
    %v1288 = vmul.f32 %v1286, 1.442695
    %v1289 = vpow.pop %v1288
    %v1290 = vmul.f32 %v1287, 1.442695
    %v1291 = vpow.pop %v1290
    %v1292 = vsel %vm136, %v1289, 0.0
    %1293 = vadd.xlane.f32.xlu0 %v1292
    %v1294 = vpop.xlane.xlu0 %1293
    %v1295 = vsel %vm136, %v1291, 0.0
    %1296 = vadd.xlane.f32.xlu0 %v1295
    %v1297 = vpop.xlane.xlu0 %1296
    %v1298 = vrcp.pop %v1294
    %v1299 = vrcp.pop %v1297
    %v1300 = vmul.f32 %v1289, %v1298
    %v1301 = vmul.f32 %v1291, %v1299
    %1302 = vrot.lane.b32.xlu0 %v125, 40
    %v1303 = vpop.permute.xlu0 %1302
    %v1306 = vsel %vm136, %v1300, 0
    %1308 = vmatprep.subr.mxu0 0.0
    %1309 = vmatpush1.msra.mxu0 %v1303
    %1310 = vmatprep.subr.mxu0 0.0
    %1311 = vmatpush1.msra.mxu0 0.0
    %1312 = vmatprep.subr.mxu0 0.0
    %1313 = vmatpush1.msra.mxu0 0.0
    %1314 = vmatprep.subr.mxu0 0.0
    %1315 = vmatpush1.msra.mxu0 0.0
    %1316 = vmatprep.subr.mxu0 0.0
    %1317 = vmatpush1.msra.mxu0 0.0
    %1318 = vmatprep.subr.mxu0 0.0
    %1319 = vmatpush1.msra.mxu0 0.0
    %1320 = vmatprep.subr.mxu0 0.0
    %1321 = vmatpush1.msra.mxu0 0.0
    %1322 = vmatprep.subr.mxu0 0.0
    %1323 = vmatpush1.msra.mxu0 0.0
    %1324 = vmatprep.subr.mxu0 0.0
    %1325 = vmatpush1.msra.mxu0 0.0
    %1326 = vmatprep.subr.mxu0 0.0
    %1327 = vmatpush1.msra.mxu0 0.0
    %1328 = vmatprep.subr.mxu0 0.0
    %1329 = vmatpush1.msra.mxu0 0.0
    %1330 = vmatprep.subr.mxu0 0.0
    %1331 = vmatpush1.msra.mxu0 0.0
    %1332 = vmatprep.subr.mxu0 0.0
    %1333 = vmatpush1.msra.mxu0 0.0
    %1334 = vmatprep.subr.mxu0 0.0
    %1335 = vmatpush1.msra.mxu0 0.0
    %1336 = vmatprep.subr.mxu0 0.0
    %1337 = vmatpush1.msra.mxu0 0.0
    %1338 = vmatprep.subr.mxu0 0.0
    %1339 = vmatpush1.msra.mxu0 0.0
    %1340 = vmatprep.subr.mxu0 0.0
    %1341 = vmatpush1.msra.mxu0 0.0
    %1342 = vmatprep.subr.mxu0 0.0
    %1343 = vmatpush1.msra.mxu0 0.0
    %1344 = vmatprep.subr.mxu0 0.0
    %1345 = vmatpush1.msra.mxu0 0.0
    %1346 = vmatprep.subr.mxu0 0.0
    %1347 = vmatpush1.msra.mxu0 0.0
    %1348 = vmatprep.subr.mxu0 0.0
    %1349 = vmatpush1.msra.mxu0 0.0
    %1350 = vmatprep.subr.mxu0 0.0
    %1351 = vmatpush1.msra.mxu0 0.0
    %1352 = vmatprep.subr.mxu0 0.0
    %1353 = vmatpush1.msra.mxu0 0.0
    %1354 = vmatprep.subr.mxu0 0.0
    %1355 = vmatpush1.msra.mxu0 0.0
    %1356 = vmatprep.subr.mxu0 0.0
    %1357 = vmatpush1.msra.mxu0 0.0
    %1358 = vmatprep.subr.mxu0 0.0
    %1359 = vmatpush1.msra.mxu0 0.0
    %1360 = vmatprep.subr.mxu0 0.0
    %1361 = vmatpush1.msra.mxu0 0.0
    %1362 = vmatprep.subr.mxu0 0.0
    %1363 = vmatpush1.msra.mxu0 0.0
    %1364 = vmatprep.subr.mxu0 0.0
    %1365 = vmatpush1.msra.mxu0 0.0
    %1366 = vmatprep.subr.mxu0 0.0
    %1367 = vmatpush1.msra.mxu0 0.0
    %1368 = vmatprep.subr.mxu0 0.0
    %1369 = vmatpush1.msra.mxu0 0.0
    %1370 = vmatprep.subr.mxu0 0.0
    %1371 = vmatpush1.msra.mxu0 0.0
    %1372 = vmatprep.mubr.f32.mxu0 0.0
    %1373 = vmatmul.mubr.f32.gmra.mrb[0].mxu0 %v1306
    %v1374 = vpop.f32.mrb[0].mxu0
    %v1375 = vadd.f32 0.0, %v1374
    %v1376 = vpop.f32.mrb[0].mxu0
    %1377 = vdwg.mxu0
    %1378 = vrot.lane.b32.xlu0 %v128, 40
    %v1379 = vpop.permute.xlu0 %1378
    %v1382 = vsel %vm136, %v1301, 0
    %1384 = vmatprep.subr.mxu0 0.0
    %1385 = vmatpush1.msra.mxu0 %v1379
    %1386 = vmatprep.subr.mxu0 0.0
    %1387 = vmatpush1.msra.mxu0 0.0
    %1388 = vmatprep.subr.mxu0 0.0
    %1389 = vmatpush1.msra.mxu0 0.0
    %1390 = vmatprep.subr.mxu0 0.0
    %1391 = vmatpush1.msra.mxu0 0.0
    %1392 = vmatprep.subr.mxu0 0.0
    %1393 = vmatpush1.msra.mxu0 0.0
    %1394 = vmatprep.subr.mxu0 0.0
    %1395 = vmatpush1.msra.mxu0 0.0
    %1396 = vmatprep.subr.mxu0 0.0
    %1397 = vmatpush1.msra.mxu0 0.0
    %1398 = vmatprep.subr.mxu0 0.0
    %1399 = vmatpush1.msra.mxu0 0.0
    %1400 = vmatprep.subr.mxu0 0.0
    %1401 = vmatpush1.msra.mxu0 0.0
    %1402 = vmatprep.subr.mxu0 0.0
    %1403 = vmatpush1.msra.mxu0 0.0
    %1404 = vmatprep.subr.mxu0 0.0
    %1405 = vmatpush1.msra.mxu0 0.0
    %1406 = vmatprep.subr.mxu0 0.0
    %1407 = vmatpush1.msra.mxu0 0.0
    %1408 = vmatprep.subr.mxu0 0.0
    %1409 = vmatpush1.msra.mxu0 0.0
    %1410 = vmatprep.subr.mxu0 0.0
    %1411 = vmatpush1.msra.mxu0 0.0
    %1412 = vmatprep.subr.mxu0 0.0
    %1413 = vmatpush1.msra.mxu0 0.0
    %1414 = vmatprep.subr.mxu0 0.0
    %1415 = vmatpush1.msra.mxu0 0.0
    %1416 = vmatprep.subr.mxu0 0.0
    %1417 = vmatpush1.msra.mxu0 0.0
    %1418 = vmatprep.subr.mxu0 0.0
    %1419 = vmatpush1.msra.mxu0 0.0
    %1420 = vmatprep.subr.mxu0 0.0
    %1421 = vmatpush1.msra.mxu0 0.0
    %1422 = vmatprep.subr.mxu0 0.0
    %1423 = vmatpush1.msra.mxu0 0.0
    %1424 = vmatprep.subr.mxu0 0.0
    %1425 = vmatpush1.msra.mxu0 0.0
    %1426 = vmatprep.subr.mxu0 0.0
    %1427 = vmatpush1.msra.mxu0 0.0
    %1428 = vmatprep.subr.mxu0 0.0
    %1429 = vmatpush1.msra.mxu0 0.0
    %1430 = vmatprep.subr.mxu0 0.0
    %1431 = vmatpush1.msra.mxu0 0.0
    %1432 = vmatprep.subr.mxu0 0.0
    %1433 = vmatpush1.msra.mxu0 0.0
    %1434 = vmatprep.subr.mxu0 0.0
    %1435 = vmatpush1.msra.mxu0 0.0
    %1436 = vmatprep.subr.mxu0 0.0
    %1437 = vmatpush1.msra.mxu0 0.0
    %1438 = vmatprep.subr.mxu0 0.0
    %1439 = vmatpush1.msra.mxu0 0.0
    %1440 = vmatprep.subr.mxu0 0.0
    %1441 = vmatpush1.msra.mxu0 0.0
    %1442 = vmatprep.subr.mxu0 0.0
    %1443 = vmatpush1.msra.mxu0 0.0
    %1444 = vmatprep.subr.mxu0 0.0
    %1445 = vmatpush1.msra.mxu0 0.0
    %1446 = vmatprep.subr.mxu0 0.0
    %1447 = vmatpush1.msra.mxu0 0.0
    %1448 = vmatprep.mubr.f32.mxu0 0.0
    %1449 = vmatmul.mubr.f32.gmra.mrb[0].mxu0 %v1382
    %v1450 = vpop.f32.mrb[0].mxu0
    %v1451 = vadd.f32 0.0, %v1450
    %v1452 = vpop.f32.mrb[0].mxu0
    %1453 = vdwg.mxu0
    %1456 = vrot.lane.b32.xlu0 %v715, 8
    %v1457 = vpop.permute.xlu0 %1456
    %1458 = vrot.lane.b32.xlu0 %v791, 8
    %v1459 = vpop.permute.xlu0 %1458
    %1464 = vrot.lane.b32.xlu0 %v1045, 16
    %v1465 = vpop.permute.xlu0 %1464
    %1466 = vrot.lane.b32.xlu0 %v1121, 16
    %v1467 = vpop.permute.xlu0 %1466
    %1472 = vrot.lane.b32.xlu0 %v1375, 24
    %v1473 = vpop.permute.xlu0 %1472
    %1474 = vrot.lane.b32.xlu0 %v1451, 24
    %v1475 = vpop.permute.xlu0 %1474
    %v1478 = vsel %vm136, %v385, %v1457
    %v1479 = vsel %vm136, %v461, %v1459
    %vm1480 = vcmask 130048
    %v1481 = vsel %vm1480, %v1478, %v1465
    %v1482 = vsel %vm1480, %v1479, %v1467
    %vm1483 = vcmask 195584
    %v1484 = vsel %vm1483, %v1481, %v1473
    %v1485 = vsel %vm1483, %v1482, %v1475
    %v1486 = vpack.c.bf16 %v1485, %v1484
    %v1487 = vld [vmem:[%s3] sm:$0xf]
    %v1488 = vld [vmem:[%s3 + $0x4] sm:$0xf]
    %v1489 = vld [vmem:[%s3 + $0x8] sm:$0xf]
    %v1490 = vld [vmem:[%s3 + $0xc] sm:$0xf]
    %v1491 = vld [vmem:[%s4] sm:$0x1]
    %v1493 = vlaneseq
    %v1494 = vshrl.u32 %v1493, 7
    %v1495 = vsub.s32 0, %v1494
    %v1496 = vrot.slane %v1491, %v1495
    %v1502 = vunpack.c.l.b16 %v1487
    %v1503 = vunpack.c.l.b16 %v1488
    %v1504 = vunpack.c.l.b16 %v1489
    %v1505 = vunpack.c.l.b16 %v1490
    %v1506 = vpack.c.b16 %v1503, %v1502
    %v1507 = vpack.c.b16 %v1505, %v1504
    %v1511 = vsel %vm86, %v1486, 0
    %1513 = vmatprep.subr.bf16.mxu0 0
    %1514 = vmatpush1.bf16.msra.mxu0 %v1506
    %1515 = vmatprep.subr.bf16.mxu0 0
    %1516 = vmatpush1.bf16.msra.mxu0 %v1507
    %1517 = vmatprep.subr.bf16.mxu0 0
    %1518 = vmatpush1.bf16.msra.mxu0 0
    %1519 = vmatprep.subr.bf16.mxu0 0
    %1520 = vmatpush1.bf16.msra.mxu0 0
    %1521 = vmatprep.subr.bf16.mxu0 0
    %1522 = vmatpush1.bf16.msra.mxu0 0
    %1523 = vmatprep.subr.bf16.mxu0 0
    %1524 = vmatpush1.bf16.msra.mxu0 0
    %1525 = vmatprep.subr.bf16.mxu0 0
    %1526 = vmatpush1.bf16.msra.mxu0 0
    %1527 = vmatprep.subr.bf16.mxu0 0
    %1528 = vmatpush1.bf16.msra.mxu0 0
    %1529 = vmatprep.subr.bf16.mxu0 0
    %1530 = vmatpush1.bf16.msra.mxu0 0
    %1531 = vmatprep.subr.bf16.mxu0 0
    %1532 = vmatpush1.bf16.msra.mxu0 0
    %1533 = vmatprep.subr.bf16.mxu0 0
    %1534 = vmatpush1.bf16.msra.mxu0 0
    %1535 = vmatprep.subr.bf16.mxu0 0
    %1536 = vmatpush1.bf16.msra.mxu0 0
    %1537 = vmatprep.subr.bf16.mxu0 0
    %1538 = vmatpush1.bf16.msra.mxu0 0
    %1539 = vmatprep.subr.bf16.mxu0 0
    %1540 = vmatpush1.bf16.msra.mxu0 0
    %1541 = vmatprep.subr.bf16.mxu0 0
    %1542 = vmatpush1.bf16.msra.mxu0 0
    %1543 = vmatprep.subr.bf16.mxu0 0
    %1544 = vmatpush1.bf16.msra.mxu0 0
    %1545 = vmatprep.mubr.bf16.mxu0 0
    %1546 = vmatmul.mubr.bf16.gmra.mrb[0].mxu0 %v1511
    %v1547 = vpop.f32.mrb[0].mxu0
    %v1548 = vadd.f32 %v1496, %v1547
    %v1549 = vpop.f32.mrb[0].mxu0
    %v1550 = vpop.f32.mrb[0].mxu0
    %v1551 = vadd.f32 %v1496, %v1550
    %v1552 = vpop.f32.mrb[0].mxu0
    %1553 = vdwg.mxu0
    %v1554 = vadd.f32 %v1548, %v60
    %v1555 = vadd.f32 %v1551, %v61
    %v1556 = vld [vmem:[%s5] sm:$0x1]
    %v1557 = vld [vmem:[%s6] sm:$0x1]
    %v1558 = vsel %vm86, %v1554, 0.0
    %1559 = vadd.xlane.f32.xlu0 %v1558
    %v1560 = vpop.xlane.xlu0 %1559
    %v1561 = vsel %vm86, %v1555, 0.0
    %1562 = vadd.xlane.f32.xlu0 %v1561
    %v1563 = vpop.xlane.xlu0 %1562
    %v1564 = vrcp.pop 32.0
    %v1565 = vmul.f32 %v1560, %v1564
    %v1566 = vmul.f32 %v1563, %v1564
    %v1567 = vsub.f32 %v1554, %v1565
    %v1568 = vsub.f32 %v1555, %v1566
    %v1569 = vmul.f32 %v1567, %v1567
    %v1570 = vmul.f32 %v1568, %v1568
    %v1571 = vsel %vm86, %v1569, 0.0
    %1572 = vadd.xlane.f32.xlu0 %v1571
    %v1573 = vpop.xlane.xlu0 %1572
    %v1574 = vsel %vm86, %v1570, 0.0
    %1575 = vadd.xlane.f32.xlu0 %v1574
    %v1576 = vpop.xlane.xlu0 %1575
    %v1577 = vmul.f32 %v1573, %v1564
    %v1578 = vmul.f32 %v1576, %v1564
    %v1579 = vadd.f32 %v1577, 1e-05
    %v1580 = vadd.f32 %v1578, 1e-05
    %v1581 = vrsqrt.pop %v1579
    %v1582 = vrsqrt.pop %v1580
    %v1583 = vmul.f32 %v1567, %v1581
    %v1584 = vmul.f32 %v1568, %v1582
    %v1586 = vlaneseq
    %v1587 = vshrl.u32 %v1586, 7
    %v1588 = vsub.s32 0, %v1587
    %v1589 = vrot.slane %v1556, %v1588
    %v1591 = vmul.f32 %v1583, %v1589
    %v1592 = vmul.f32 %v1584, %v1589
    %v1594 = vlaneseq
    %v1595 = vshrl.u32 %v1594, 7
    %v1596 = vsub.s32 0, %v1595
    %v1597 = vrot.slane %v1557, %v1596
    %v1599 = vadd.f32 %v1591, %v1597
    %v1600 = vadd.f32 %v1592, %v1597
    %v1601 = vpack.c.bf16 %v1600, %v1599
    %v1602 = vld [vmem:[#allocation2] sm:$0xf]
    %v1603 = vld [vmem:[#allocation2 + $0x4] sm:$0xf]
    %v1604 = vld [vmem:[#allocation2 + $0x8] sm:$0xf]
    %v1605 = vld [vmem:[#allocation2 + $0xc] sm:$0xf]
    %v1606 = vld [vmem:[%s8] sm:$0x1]
    %v1608 = vlaneseq
    %v1609 = vshrl.u32 %v1608, 7
    %v1610 = vsub.s32 0, %v1609
    %v1611 = vrot.slane %v1606, %v1610
    %v1617 = vunpack.c.l.b16 %v1602
    %v1618 = vunpack.c.l.b16 %v1603
    %v1619 = vunpack.c.l.b16 %v1604
    %v1620 = vunpack.c.l.b16 %v1605
    %v1621 = vpack.c.b16 %v1618, %v1617
    %v1622 = vpack.c.b16 %v1620, %v1619
    %v1626 = vsel %vm86, %v1601, 0
    %1628 = vmatprep.subr.bf16.mxu0 0
    %1629 = vmatpush1.bf16.msra.mxu0 %v1621
    %1630 = vmatprep.subr.bf16.mxu0 0
    %1631 = vmatpush1.bf16.msra.mxu0 %v1622
    %1632 = vmatprep.subr.bf16.mxu0 0
    %1633 = vmatpush1.bf16.msra.mxu0 0
    %1634 = vmatprep.subr.bf16.mxu0 0
    %1635 = vmatpush1.bf16.msra.mxu0 0
    %1636 = vmatprep.subr.bf16.mxu0 0
    %1637 = vmatpush1.bf16.msra.mxu0 0
    %1638 = vmatprep.subr.bf16.mxu0 0
    %1639 = vmatpush1.bf16.msra.mxu0 0
    %1640 = vmatprep.subr.bf16.mxu0 0
    %1641 = vmatpush1.bf16.msra.mxu0 0
    %1642 = vmatprep.subr.bf16.mxu0 0
    %1643 = vmatpush1.bf16.msra.mxu0 0
    %1644 = vmatprep.subr.bf16.mxu0 0
    %1645 = vmatpush1.bf16.msra.mxu0 0
    %1646 = vmatprep.subr.bf16.mxu0 0
    %1647 = vmatpush1.bf16.msra.mxu0 0
    %1648 = vmatprep.subr.bf16.mxu0 0
    %1649 = vmatpush1.bf16.msra.mxu0 0
    %1650 = vmatprep.subr.bf16.mxu0 0
    %1651 = vmatpush1.bf16.msra.mxu0 0
    %1652 = vmatprep.subr.bf16.mxu0 0
    %1653 = vmatpush1.bf16.msra.mxu0 0
    %1654 = vmatprep.subr.bf16.mxu0 0
    %1655 = vmatpush1.bf16.msra.mxu0 0
    %1656 = vmatprep.subr.bf16.mxu0 0
    %1657 = vmatpush1.bf16.msra.mxu0 0
    %1658 = vmatprep.subr.bf16.mxu0 0
    %1659 = vmatpush1.bf16.msra.mxu0 0
    %1660 = vmatprep.mubr.bf16.mxu0 0
    %1661 = vmatmul.mubr.bf16.gmra.mrb[0].mxu0 %v1626
    %v1662 = vpop.f32.mrb[0].mxu0
    %v1663 = vadd.f32 %v1611, %v1662
    %v1664 = vpop.f32.mrb[0].mxu0
    %v1665 = vpop.f32.mrb[0].mxu0
    %v1666 = vadd.f32 %v1611, %v1665
    %v1667 = vpop.f32.mrb[0].mxu0
    %1668 = vdwg.mxu0
    %v1669 = vmax.f32 %v1663, 0.0
    %v1670 = vmax.f32 %v1666, 0.0
    %v1671 = vpack.c.bf16 %v1670, %v1669
    %v1672 = vld [vmem:[%s9] sm:$0xf]
    %v1673 = vld [vmem:[%s9 + $0x4] sm:$0xf]
    %v1674 = vld [vmem:[%s9 + $0x8] sm:$0xf]
    %v1675 = vld [vmem:[%s9 + $0xc] sm:$0xf]
    %v1676 = vld [vmem:[%s9 + $0x10] sm:$0xf]
    %v1677 = vld [vmem:[%s9 + $0x14] sm:$0xf]
    %v1678 = vld [vmem:[%s9 + $0x18] sm:$0xf]
    %v1679 = vld [vmem:[%s9 + $0x1c] sm:$0xf]
    %v1680 = vld [vmem:[%s10] sm:$0x1]
    %v1682 = vlaneseq
    %v1683 = vshrl.u32 %v1682, 7
    %v1684 = vsub.s32 0, %v1683
    %v1685 = vrot.slane %v1680, %v1684
    %v1695 = vunpack.c.l.b16 %v1672
    %v1696 = vunpack.c.l.b16 %v1673
    %v1697 = vunpack.c.l.b16 %v1674
    %v1698 = vunpack.c.l.b16 %v1675
    %v1699 = vunpack.c.l.b16 %v1676
    %v1700 = vunpack.c.l.b16 %v1677
    %v1701 = vunpack.c.l.b16 %v1678
    %v1702 = vunpack.c.l.b16 %v1679
    %v1703 = vpack.c.b16 %v1696, %v1695
    %v1704 = vpack.c.b16 %v1698, %v1697
    %v1705 = vpack.c.b16 %v1700, %v1699
    %v1706 = vpack.c.b16 %v1702, %v1701
    %vm1711 = vcmask 523264
    %v1713 = vsel %vm1711, %v1671, 0
    %1715 = vmatprep.subr.bf16.mxu0 0
    %1716 = vmatpush1.bf16.msra.mxu0 %v1703
    %1717 = vmatprep.subr.bf16.mxu0 0
    %1718 = vmatpush1.bf16.msra.mxu0 %v1704
    %1719 = vmatprep.subr.bf16.mxu0 0
    %1720 = vmatpush1.bf16.msra.mxu0 %v1705
    %1721 = vmatprep.subr.bf16.mxu0 0
    %1722 = vmatpush1.bf16.msra.mxu0 %v1706
    %1723 = vmatprep.subr.bf16.mxu0 0
    %1724 = vmatpush1.bf16.msra.mxu0 0
    %1725 = vmatprep.subr.bf16.mxu0 0
    %1726 = vmatpush1.bf16.msra.mxu0 0
    %1727 = vmatprep.subr.bf16.mxu0 0
    %1728 = vmatpush1.bf16.msra.mxu0 0
    %1729 = vmatprep.subr.bf16.mxu0 0
    %1730 = vmatpush1.bf16.msra.mxu0 0
    %1731 = vmatprep.subr.bf16.mxu0 0
    %1732 = vmatpush1.bf16.msra.mxu0 0
    %1733 = vmatprep.subr.bf16.mxu0 0
    %1734 = vmatpush1.bf16.msra.mxu0 0
    %1735 = vmatprep.subr.bf16.mxu0 0
    %1736 = vmatpush1.bf16.msra.mxu0 0
    %1737 = vmatprep.subr.bf16.mxu0 0
    %1738 = vmatpush1.bf16.msra.mxu0 0
    %1739 = vmatprep.subr.bf16.mxu0 0
    %1740 = vmatpush1.bf16.msra.mxu0 0
    %1741 = vmatprep.subr.bf16.mxu0 0
    %1742 = vmatpush1.bf16.msra.mxu0 0
    %1743 = vmatprep.subr.bf16.mxu0 0
    %1744 = vmatpush1.bf16.msra.mxu0 0
    %1745 = vmatprep.subr.bf16.mxu0 0
    %1746 = vmatpush1.bf16.msra.mxu0 0
    %1747 = vmatprep.mubr.bf16.mxu0 0
    %1748 = vmatmul.mubr.bf16.gmra.mrb[0].mxu0 %v1713
    %v1749 = vpop.f32.mrb[0].mxu0
    %v1750 = vadd.f32 %v1685, %v1749
    %v1751 = vpop.f32.mrb[0].mxu0
    %v1752 = vpop.f32.mrb[0].mxu0
    %v1753 = vadd.f32 %v1685, %v1752
    %v1754 = vpop.f32.mrb[0].mxu0
    %1755 = vdwg.mxu0
    %v1756 = vadd.f32 %v1750, %v1599
    %v1757 = vadd.f32 %v1753, %v1600
    %v1758 = vld [vmem:[%s11] sm:$0x1]
    %v1759 = vld [vmem:[%s12] sm:$0x1]
    %v1760 = vsel %vm86, %v1756, 0.0
    %1761 = vadd.xlane.f32.xlu0 %v1760
    %v1762 = vpop.xlane.xlu0 %1761
    %v1763 = vsel %vm86, %v1757, 0.0
    %1764 = vadd.xlane.f32.xlu0 %v1763
    %v1765 = vpop.xlane.xlu0 %1764
    %v1766 = vmul.f32 %v1762, %v1564
    %v1767 = vmul.f32 %v1765, %v1564
    %v1768 = vsub.f32 %v1756, %v1766
    %v1769 = vsub.f32 %v1757, %v1767
    %v1770 = vmul.f32 %v1768, %v1768
    %v1771 = vmul.f32 %v1769, %v1769
    %v1772 = vsel %vm86, %v1770, 0.0
    %1773 = vadd.xlane.f32.xlu0 %v1772
    %v1774 = vpop.xlane.xlu0 %1773
    %v1775 = vsel %vm86, %v1771, 0.0
    %1776 = vadd.xlane.f32.xlu0 %v1775
    %v1777 = vpop.xlane.xlu0 %1776
    %v1778 = vmul.f32 %v1774, %v1564
    %v1779 = vmul.f32 %v1777, %v1564
    %v1780 = vadd.f32 %v1778, 1e-05
    %v1781 = vadd.f32 %v1779, 1e-05
    %v1782 = vrsqrt.pop %v1780
    %v1783 = vrsqrt.pop %v1781
    %v1784 = vmul.f32 %v1768, %v1782
    %v1785 = vmul.f32 %v1769, %v1783
    %v1787 = vlaneseq
    %v1788 = vshrl.u32 %v1787, 7
    %v1789 = vsub.s32 0, %v1788
    %v1790 = vrot.slane %v1758, %v1789
    %v1792 = vmul.f32 %v1784, %v1790
    %v1793 = vmul.f32 %v1785, %v1790
    %v1795 = vlaneseq
    %v1796 = vshrl.u32 %v1795, 7
    %v1797 = vsub.s32 0, %v1796
    %v1798 = vrot.slane %v1759, %v1797
    %v1800 = vadd.f32 %v1792, %v1798
    %v1801 = vadd.f32 %v1793, %v1798
    %1802 = vst.msk [vmem:[#allocation5] sm:$0xff] %vm86, %v1800
    %1803 = vst.msk [vmem:[#allocation5 + $0x8] sm:$0xff] %vm86, %v1801
    // Predicated region
    $region58: #{tpu_custom_call.1} parent=1 // pred_check
      _
    $region59: #{tpu_custom_call.1} parent=1 // pred_check_branch
      %1805 = sbr.rel (0) target = $region61
    $region60: #{tpu_custom_call.1} parent=1 // pred_region
      %s1807 = ssub.s32 256, 256
      %1808 = vsyncadd [#allocation4], %s1807
      %s1809 = sshll.u32 [#allocation5], 4
      %s1810 = int_to_ptr.vmem [resolvable:$true] %s1809
      %1815 = dma.vmem_to_hbm [thread:$0]  %s1810, 256, %s13, [#allocation4], 128, 128, 8
    $region61: #{tpu_custom_call.1} parent=1 // pred_fallthru
      _
    // Predicated region
    $region62: #{tpu_custom_call.1} parent=1 // pred_check
      _
    $region63: #{tpu_custom_call.1} parent=1 // pred_check_branch
      %1817 = sbr.rel (0) target = $region65
    $region64: #{tpu_custom_call.1} parent=1 // pred_region
      %1818 = dma.done [#allocation4], 256
    $region65: #{tpu_custom_call.1} parent=1 // pred_fallthru
      _
    %1819 = vsyncpa [#allocation3], 1
    %1820 = vsyncpa [#allocation4], 1

</llo_original>
